<compile_context>
chip_gen: v5e
topology: v5e:2x2
jax: 0.10.0
libtpu: 0.0.40
codegen_flags: <defaults>
</compile_context>

<pallas_src>
import jax
import jax.numpy as jnp
import numpy as np
from jax.experimental import pallas as pl
from jax.experimental.pallas import tpu as pltpu


def _make_resblock_kernel(C, Cs, K, bias_row, Hp, Wp, nb):
    P = Hp * Wp                # flattened padded spatial size per image
    M = P - 2 * (Wp + 1)       # conv centers computed per image (incl. junk cols)
    L = nb * M                 # batched lane width of the tap matrix / matmul

    def kernel(x_ref, w0_ref, w1_ref, mask_ref, out_ref, t_ref, pad_ref):
        # x_ref:    (nb, C, P)   zero-padded inputs, spatial flattened on lanes
        # w*_ref:   (C, K)       packed conv weights (tap-major Cs-row blocks) + bias col
        # mask_ref: (1, nb*M)    1.0 at real pixels, 0.0 at junk pad columns (tiled per image)
        # out_ref:  (nb, C, P)   result written in padded per-image coordinates
        # t_ref:    (K, nb*M)    batched im2col tap matrix
        # pad_ref:  (C, nb*P)    padded activation scratch (images side by side on lanes)

        # Re-establish the constant parts of the tap matrix every step
        # (unconditional so it is also correct when the grid is split across
        # TensorCores): zero the sublane padding rows, set the bias row to 1.
        t_ref[...] = jnp.zeros_like(t_ref)
        t_ref[bias_row:bias_row + 1, :] = jnp.ones((1, L), jnp.float32)

        # relu(x) into the padded activation scratch; x's zero spatial border
        # is preserved by relu, which re-establishes the guard strips.
        for i in range(nb):
            pad_ref[:, i * P:(i + 1) * P] = jnp.maximum(x_ref[i], 0.0)

        def im2col():
            # Each tap is a contiguous flat slice of the padded activation at
            # offset dy*Wp+dx; destinations are 8-aligned Cs-row blocks.
            for t in range(9):
                off = (t // 3) * Wp + (t % 3)
                for i in range(nb):
                    t_ref[t * Cs:t * Cs + C, i * M:(i + 1) * M] = (
                        pad_ref[:, i * P + off:i * P + off + M])

        # conv0 (+bias via the constant-1 row): one MXU matmul for all nb images.
        im2col()
        y0 = jnp.dot(w0_ref[...], t_ref[...], preferred_element_type=jnp.float32)

        # relu, and re-zero the junk left/right padding columns before the
        # values feed the second conv as neighbours.
        h = jnp.maximum(y0, 0.0) * mask_ref[...]
        for i in range(nb):
            pad_ref[:, i * P + Wp + 1:i * P + Wp + 1 + M] = h[:, i * M:(i + 1) * M]

        # conv1 (+bias): again a single matmul for the whole step.
        im2col()
        y1 = jnp.dot(w1_ref[...], t_ref[...], preferred_element_type=jnp.float32)

        # residual add against the (pre-relu) input, stored directly in padded
        # per-image coordinates; border/junk lanes are discarded by the wrapper.
        for i in range(nb):
            xi = x_ref[i]                                  # (C, P)
            out_ref[i, :, Wp + 1:Wp + 1 + M] = (
                y1[:, i * M:(i + 1) * M] + xi[:, Wp + 1:Wp + 1 + M])

    return kernel


def _tensorcores_per_chip():
    try:
        kind = jax.devices()[0].device_kind.lower()
    except Exception:
        return 1
    # v7x parts expose 2 TensorCores per chip; v5e / v6e have 1.
    return 2 if "7" in kind else 1


def _pick_batch_block(n):
    """Images per grid step. Single-TC parts (v5e/v6e): fold the whole batch
    into one step (extra steps are pure ~0.35us serial overhead). Dual-TC
    parts (v7x): two balanced steps so both cores get work. Capped to bound
    the unrolled tap-copy count / VMEM footprint at large N."""
    cap = 16
    if n <= 1:
        return 1
    nb = -(-n // 2) if _tensorcores_per_chip() >= 2 else n
    return min(nb, cap)


def residual_block_pallas(x_nchw, w0, b0, w1, b1):
    """x_nchw: (N, C, H, W) f32; w*: (C, C, 3, 3) OIHW (PyTorch); b*: (C,)."""
    N, C, H, W = x_nchw.shape
    Hp, Wp = H + 2, W + 2
    P = Hp * Wp
    M = P - 2 * (Wp + 1)

    Cs = ((C + 7) // 8) * 8               # sublane-aligned per-tap row stride
    if C < Cs:
        bias_row, K = C, 9 * Cs           # bias row fits in tap 0's padding rows
    else:
        bias_row, K = 9 * Cs, 9 * Cs + 8  # extra aligned block for the bias row

    nb = _pick_batch_block(N)
    steps = -(-N // nb)
    Np = steps * nb

    # NCHW -> (Np, C, Hp*Wp): pad batch to a multiple of nb, zero-pad spatial,
    # flatten spatial onto lanes (channels stay on sublanes; no transpose).
    x_pad = jnp.pad(x_nchw.astype(jnp.float32),
                    ((0, Np - N), (0, 0), (1, 1), (1, 1))).reshape(Np, C, P)

    def pack(w, b):
        # OIHW -> (C_out, K): tap-major Cs-row blocks (tap t = dy*3+dx, then
        # c_in, zero-padded to Cs), bias in the column hit by the constant-1 row.
        wt = jnp.transpose(w.astype(jnp.float32), (0, 2, 3, 1)).reshape(C, 9, C)
        wt = jnp.pad(wt, ((0, 0), (0, 0), (0, Cs - C))).reshape(C, 9 * Cs)
        wk = jnp.pad(wt, ((0, 0), (0, K - 9 * Cs)))
        return wk.at[:, bias_row].set(b.astype(jnp.float32))

    wpk0 = pack(w0, b0)
    wpk1 = pack(w1, b1)

    # Interior mask in compact coordinates (compact p -> padded index p+Wp+1),
    # tiled across the nb images of a grid step: 0.0 where the conv centre sits
    # on a left/right zero-padding column.
    cols = (np.arange(M) + Wp + 1) % Wp
    mask1 = ((cols >= 1) & (cols <= W)).astype(np.float32)
    mask = jnp.asarray(np.tile(mask1, nb)[None, :])           # (1, nb*M)

    kernel = _make_resblock_kernel(C, Cs, K, bias_row, Hp, Wp, nb)

    out_pad = pl.pallas_call(
        kernel,
        out_shape=jax.ShapeDtypeStruct((Np, C, P), jnp.float32),
        grid_spec=pltpu.PrefetchScalarGridSpec(
            num_scalar_prefetch=0,
            grid=(steps,),
            in_specs=[
                pl.BlockSpec((nb, C, P), lambda n: (n, 0, 0)),
                pl.BlockSpec((C, K), lambda n: (0, 0)),
                pl.BlockSpec((C, K), lambda n: (0, 0)),
                pl.BlockSpec((1, nb * M), lambda n: (0, 0)),
            ],
            out_specs=pl.BlockSpec((nb, C, P), lambda n: (n, 0, 0)),
            scratch_shapes=[
                pltpu.VMEM((K, nb * M), jnp.float32),   # batched im2col tap matrix
                pltpu.VMEM((C, nb * P), jnp.float32),   # padded activations
            ],
        ),
        compiler_params=pltpu.CompilerParams(
            dimension_semantics=("parallel",)),
    )(x_pad, wpk0, wpk1, mask)

    # padded flat -> (Hp, Wp) -> interior (H, W); drop the batch padding.
    return out_pad.reshape(Np, C, Hp, Wp)[:N, :, 1:H + 1, 1:W + 1]


def residual_block_ref(x, w0, b0, w1, b1):
    """Plain-JAX reference matching the PyTorch module (NCHW)."""
    def conv(h, w, b):
        y = jax.lax.conv_general_dilated(
            h, w, window_strides=(1, 1), padding=((1, 1), (1, 1)),
            dimension_numbers=("NCHW", "OIHW", "NCHW"))
        return y + b.reshape(1, -1, 1, 1)

    h = jax.nn.relu(x)
    h = conv(h, w0, b0)
    h = jax.nn.relu(h)
    h = conv(h, w1, b1)
    return h + x


if __name__ == "__main__":
    # Small shapes consistent with the module: batch=2, channels=4, spatial=16.
    N, C, H, W = 2, 4, 16, 16
    key = jax.random.PRNGKey(0)
    kx, kw0, kb0, kw1, kb1 = jax.random.split(key, 5)

    x = jax.random.normal(kx, (N, C, H, W), dtype=jnp.float32)

    # Deterministic parameter init mimicking PyTorch's default Conv2d init
    # (uniform in +/- 1/sqrt(fan_in), fan_in = C * 3 * 3).
    bound = 1.0 / np.sqrt(C * 3 * 3)
    w0 = jax.random.uniform(kw0, (C, C, 3, 3), jnp.float32, -bound, bound)
    b0 = jax.random.uniform(kb0, (C,), jnp.float32, -bound, bound)
    w1 = jax.random.uniform(kw1, (C, C, 3, 3), jnp.float32, -bound, bound)
    b1 = jax.random.uniform(kb1, (C,), jnp.float32, -bound, bound)

    out = residual_block_pallas(x, w0, b0, w1, b1)
    out = jax.block_until_ready(out)

    ref = residual_block_ref(x, w0, b0, w1, b1)
    np.testing.assert_allclose(np.asarray(out), np.asarray(ref), atol=1e-4, rtol=1e-4)

    print("KERNEL_OK")
</pallas_src>

<mosaic_0001>
module attributes {stable_mosaic.version = 11 : i64} {
  func.func @kernel(%arg0: i32, %arg1: memref<2x4x324xf32, #tpu.memory_space<vmem>>, %arg2: memref<4x72xf32, #tpu.memory_space<vmem>>, %arg3: memref<4x72xf32, #tpu.memory_space<vmem>>, %arg4: memref<1x572xf32, #tpu.memory_space<vmem>>, %arg5: memref<2x4x324xf32, #tpu.memory_space<vmem>>, %arg6: memref<72x572xf32, #tpu.memory_space<vmem>>, %arg7: memref<4x648xf32, #tpu.memory_space<vmem>>) attributes {dimension_semantics = [#tpu.dimension_semantics<parallel>], iteration_bounds = array<i64: 1>, scalar_prefetch = 0 : i64, scratch_operands = 2 : i64, tpu.core_type = #tpu.core_type<tc>, window_params = [{transform_indices = @transform_0, window_bounds = array<i64: 2, 4, 324>}, {pipeline_mode = #tpu.pipeline_mode<synchronous>, transform_indices = @transform_1, window_bounds = array<i64: 4, 72>}, {pipeline_mode = #tpu.pipeline_mode<synchronous>, transform_indices = @transform_2, window_bounds = array<i64: 4, 72>}, {pipeline_mode = #tpu.pipeline_mode<synchronous>, transform_indices = @transform_3, window_bounds = array<i64: 1, 572>}, {transform_indices = @transform_4, window_bounds = array<i64: 2, 4, 324>}]} {
    %cst = arith.constant 0.000000e+00 : f32
    %0 = vector.broadcast %cst : f32 to vector<72x572xf32>
    %c0 = arith.constant 0 : index
    %c0_0 = arith.constant 0 : index
    %1 = vector.load %arg6[%c0, %c0_0] : memref<72x572xf32, #tpu.memory_space<vmem>>, vector<72x572xf32>
    tpu.vector_store %arg6[%c0, %c0_0], %0 {strides = array<i32>} : memref<72x572xf32, #tpu.memory_space<vmem>>, vector<72x572xf32>,
    %cst_1 = arith.constant 1.000000e+00 : f32
    %2 = vector.broadcast %cst_1 : f32 to vector<1x572xf32>
    %c4 = arith.constant 4 : index
    %c0_2 = arith.constant 0 : index
    %3 = vector.load %arg6[%c4, %c0_2] : memref<72x572xf32, #tpu.memory_space<vmem>>, vector<1x572xf32>
    tpu.vector_store %arg6[%c4, %c0_2], %2 {strides = array<i32>} : memref<72x572xf32, #tpu.memory_space<vmem>>, vector<1x572xf32>,
    %c0_3 = arith.constant 0 : index
    %c0_4 = arith.constant 0 : index
    %c0_5 = arith.constant 0 : index
    %4 = vector.load %arg1[%c0_3, %c0_4, %c0_5] : memref<2x4x324xf32, #tpu.memory_space<vmem>>, vector<1x4x324xf32>
    %5 = vector.shape_cast %4 : vector<1x4x324xf32> to vector<4x324xf32>
    %cst_6 = arith.constant 0.000000e+00 : f32
    %6 = vector.broadcast %cst_6 : f32 to vector<4x324xf32>
    %7 = arith.maximumf %5, %6 : vector<4x324xf32>
    %c0_7 = arith.constant 0 : index
    %c0_8 = arith.constant 0 : index
    %8 = vector.load %arg7[%c0_7, %c0_8] : memref<4x648xf32, #tpu.memory_space<vmem>>, vector<4x324xf32>
    tpu.vector_store %arg7[%c0_7, %c0_8], %7 {strides = array<i32>} : memref<4x648xf32, #tpu.memory_space<vmem>>, vector<4x324xf32>,
    %c1 = arith.constant 1 : index
    %c0_9 = arith.constant 0 : index
    %c0_10 = arith.constant 0 : index
    %9 = vector.load %arg1[%c1, %c0_9, %c0_10] : memref<2x4x324xf32, #tpu.memory_space<vmem>>, vector<1x4x324xf32>
    %10 = vector.shape_cast %9 : vector<1x4x324xf32> to vector<4x324xf32>
    %cst_11 = arith.constant 0.000000e+00 : f32
    %11 = vector.broadcast %cst_11 : f32 to vector<4x324xf32>
    %12 = arith.maximumf %10, %11 : vector<4x324xf32>
    %c0_12 = arith.constant 0 : index
    %c324 = arith.constant 324 : index
    %13 = vector.load %arg7[%c0_12, %c324] : memref<4x648xf32, #tpu.memory_space<vmem>>, vector<4x324xf32>
    tpu.vector_store %arg7[%c0_12, %c324], %12 {strides = array<i32>} : memref<4x648xf32, #tpu.memory_space<vmem>>, vector<4x324xf32>,
    %c0_13 = arith.constant 0 : index
    %c0_14 = arith.constant 0 : index
    %14 = vector.load %arg7[%c0_13, %c0_14] : memref<4x648xf32, #tpu.memory_space<vmem>>, vector<4x286xf32>
    %c0_15 = arith.constant 0 : index
    %c0_16 = arith.constant 0 : index
    %15 = vector.load %arg6[%c0_15, %c0_16] : memref<72x572xf32, #tpu.memory_space<vmem>>, vector<4x286xf32>
    tpu.vector_store %arg6[%c0_15, %c0_16], %14 {strides = array<i32>} : memref<72x572xf32, #tpu.memory_space<vmem>>, vector<4x286xf32>,
    %c0_17 = arith.constant 0 : index
    %c324_18 = arith.constant 324 : index
    %16 = vector.load %arg7[%c0_17, %c324_18] : memref<4x648xf32, #tpu.memory_space<vmem>>, vector<4x286xf32>
    %c0_19 = arith.constant 0 : index
    %c286 = arith.constant 286 : index
    %17 = vector.load %arg6[%c0_19, %c286] : memref<72x572xf32, #tpu.memory_space<vmem>>, vector<4x286xf32>
    tpu.vector_store %arg6[%c0_19, %c286], %16 {strides = array<i32>} : memref<72x572xf32, #tpu.memory_space<vmem>>, vector<4x286xf32>,
    %c0_20 = arith.constant 0 : index
    %c1_21 = arith.constant 1 : index
    %18 = vector.load %arg7[%c0_20, %c1_21] : memref<4x648xf32, #tpu.memory_space<vmem>>, vector<4x286xf32>
    %c8 = arith.constant 8 : index
    %c0_22 = arith.constant 0 : index
    %19 = vector.load %arg6[%c8, %c0_22] : memref<72x572xf32, #tpu.memory_space<vmem>>, vector<4x286xf32>
    tpu.vector_store %arg6[%c8, %c0_22], %18 {strides = array<i32>} : memref<72x572xf32, #tpu.memory_space<vmem>>, vector<4x286xf32>,
    %c0_23 = arith.constant 0 : index
    %c325 = arith.constant 325 : index
    %20 = vector.load %arg7[%c0_23, %c325] : memref<4x648xf32, #tpu.memory_space<vmem>>, vector<4x286xf32>
    %c8_24 = arith.constant 8 : index
    %c286_25 = arith.constant 286 : index
    %21 = vector.load %arg6[%c8_24, %c286_25] : memref<72x572xf32, #tpu.memory_space<vmem>>, vector<4x286xf32>
    tpu.vector_store %arg6[%c8_24, %c286_25], %20 {strides = array<i32>} : memref<72x572xf32, #tpu.memory_space<vmem>>, vector<4x286xf32>,
    %c0_26 = arith.constant 0 : index
    %c2 = arith.constant 2 : index
    %22 = vector.load %arg7[%c0_26, %c2] : memref<4x648xf32, #tpu.memory_space<vmem>>, vector<4x286xf32>
    %c16 = arith.constant 16 : index
    %c0_27 = arith.constant 0 : index
    %23 = vector.load %arg6[%c16, %c0_27] : memref<72x572xf32, #tpu.memory_space<vmem>>, vector<4x286xf32>
    tpu.vector_store %arg6[%c16, %c0_27], %22 {strides = array<i32>} : memref<72x572xf32, #tpu.memory_space<vmem>>, vector<4x286xf32>,
    %c0_28 = arith.constant 0 : index
    %c326 = arith.constant 326 : index
    %24 = vector.load %arg7[%c0_28, %c326] : memref<4x648xf32, #tpu.memory_space<vmem>>, vector<4x286xf32>
    %c16_29 = arith.constant 16 : index
    %c286_30 = arith.constant 286 : index
    %25 = vector.load %arg6[%c16_29, %c286_30] : memref<72x572xf32, #tpu.memory_space<vmem>>, vector<4x286xf32>
    tpu.vector_store %arg6[%c16_29, %c286_30], %24 {strides = array<i32>} : memref<72x572xf32, #tpu.memory_space<vmem>>, vector<4x286xf32>,
    %c0_31 = arith.constant 0 : index
    %c18 = arith.constant 18 : index
    %26 = vector.load %arg7[%c0_31, %c18] : memref<4x648xf32, #tpu.memory_space<vmem>>, vector<4x286xf32>
    %c24 = arith.constant 24 : index
    %c0_32 = arith.constant 0 : index
    %27 = vector.load %arg6[%c24, %c0_32] : memref<72x572xf32, #tpu.memory_space<vmem>>, vector<4x286xf32>
    tpu.vector_store %arg6[%c24, %c0_32], %26 {strides = array<i32>} : memref<72x572xf32, #tpu.memory_space<vmem>>, vector<4x286xf32>,
    %c0_33 = arith.constant 0 : index
    %c342 = arith.constant 342 : index
    %28 = vector.load %arg7[%c0_33, %c342] : memref<4x648xf32, #tpu.memory_space<vmem>>, vector<4x286xf32>
    %c24_34 = arith.constant 24 : index
    %c286_35 = arith.constant 286 : index
    %29 = vector.load %arg6[%c24_34, %c286_35] : memref<72x572xf32, #tpu.memory_space<vmem>>, vector<4x286xf32>
    tpu.vector_store %arg6[%c24_34, %c286_35], %28 {strides = array<i32>} : memref<72x572xf32, #tpu.memory_space<vmem>>, vector<4x286xf32>,
    %c0_36 = arith.constant 0 : index
    %c19 = arith.constant 19 : index
    %30 = vector.load %arg7[%c0_36, %c19] : memref<4x648xf32, #tpu.memory_space<vmem>>, vector<4x286xf32>
    %c32 = arith.constant 32 : index
    %c0_37 = arith.constant 0 : index
    %31 = vector.load %arg6[%c32, %c0_37] : memref<72x572xf32, #tpu.memory_space<vmem>>, vector<4x286xf32>
    tpu.vector_store %arg6[%c32, %c0_37], %30 {strides = array<i32>} : memref<72x572xf32, #tpu.memory_space<vmem>>, vector<4x286xf32>,
    %c0_38 = arith.constant 0 : index
    %c343 = arith.constant 343 : index
    %32 = vector.load %arg7[%c0_38, %c343] : memref<4x648xf32, #tpu.memory_space<vmem>>, vector<4x286xf32>
    %c32_39 = arith.constant 32 : index
    %c286_40 = arith.constant 286 : index
    %33 = vector.load %arg6[%c32_39, %c286_40] : memref<72x572xf32, #tpu.memory_space<vmem>>, vector<4x286xf32>
    tpu.vector_store %arg6[%c32_39, %c286_40], %32 {strides = array<i32>} : memref<72x572xf32, #tpu.memory_space<vmem>>, vector<4x286xf32>,
    %c0_41 = arith.constant 0 : index
    %c20 = arith.constant 20 : index
    %34 = vector.load %arg7[%c0_41, %c20] : memref<4x648xf32, #tpu.memory_space<vmem>>, vector<4x286xf32>
    %c40 = arith.constant 40 : index
    %c0_42 = arith.constant 0 : index
    %35 = vector.load %arg6[%c40, %c0_42] : memref<72x572xf32, #tpu.memory_space<vmem>>, vector<4x286xf32>
    tpu.vector_store %arg6[%c40, %c0_42], %34 {strides = array<i32>} : memref<72x572xf32, #tpu.memory_space<vmem>>, vector<4x286xf32>,
    %c0_43 = arith.constant 0 : index
    %c344 = arith.constant 344 : index
    %36 = vector.load %arg7[%c0_43, %c344] : memref<4x648xf32, #tpu.memory_space<vmem>>, vector<4x286xf32>
    %c40_44 = arith.constant 40 : index
    %c286_45 = arith.constant 286 : index
    %37 = vector.load %arg6[%c40_44, %c286_45] : memref<72x572xf32, #tpu.memory_space<vmem>>, vector<4x286xf32>
    tpu.vector_store %arg6[%c40_44, %c286_45], %36 {strides = array<i32>} : memref<72x572xf32, #tpu.memory_space<vmem>>, vector<4x286xf32>,
    %c0_46 = arith.constant 0 : index
    %c36 = arith.constant 36 : index
    %38 = vector.load %arg7[%c0_46, %c36] : memref<4x648xf32, #tpu.memory_space<vmem>>, vector<4x286xf32>
    %c48 = arith.constant 48 : index
    %c0_47 = arith.constant 0 : index
    %39 = vector.load %arg6[%c48, %c0_47] : memref<72x572xf32, #tpu.memory_space<vmem>>, vector<4x286xf32>
    tpu.vector_store %arg6[%c48, %c0_47], %38 {strides = array<i32>} : memref<72x572xf32, #tpu.memory_space<vmem>>, vector<4x286xf32>,
    %c0_48 = arith.constant 0 : index
    %c360 = arith.constant 360 : index
    %40 = vector.load %arg7[%c0_48, %c360] : memref<4x648xf32, #tpu.memory_space<vmem>>, vector<4x286xf32>
    %c48_49 = arith.constant 48 : index
    %c286_50 = arith.constant 286 : index
    %41 = vector.load %arg6[%c48_49, %c286_50] : memref<72x572xf32, #tpu.memory_space<vmem>>, vector<4x286xf32>
    tpu.vector_store %arg6[%c48_49, %c286_50], %40 {strides = array<i32>} : memref<72x572xf32, #tpu.memory_space<vmem>>, vector<4x286xf32>,
    %c0_51 = arith.constant 0 : index
    %c37 = arith.constant 37 : index
    %42 = vector.load %arg7[%c0_51, %c37] : memref<4x648xf32, #tpu.memory_space<vmem>>, vector<4x286xf32>
    %c56 = arith.constant 56 : index
    %c0_52 = arith.constant 0 : index
    %43 = vector.load %arg6[%c56, %c0_52] : memref<72x572xf32, #tpu.memory_space<vmem>>, vector<4x286xf32>
    tpu.vector_store %arg6[%c56, %c0_52], %42 {strides = array<i32>} : memref<72x572xf32, #tpu.memory_space<vmem>>, vector<4x286xf32>,
    %c0_53 = arith.constant 0 : index
    %c361 = arith.constant 361 : index
    %44 = vector.load %arg7[%c0_53, %c361] : memref<4x648xf32, #tpu.memory_space<vmem>>, vector<4x286xf32>
    %c56_54 = arith.constant 56 : index
    %c286_55 = arith.constant 286 : index
    %45 = vector.load %arg6[%c56_54, %c286_55] : memref<72x572xf32, #tpu.memory_space<vmem>>, vector<4x286xf32>
    tpu.vector_store %arg6[%c56_54, %c286_55], %44 {strides = array<i32>} : memref<72x572xf32, #tpu.memory_space<vmem>>, vector<4x286xf32>,
    %c0_56 = arith.constant 0 : index
    %c38 = arith.constant 38 : index
    %46 = vector.load %arg7[%c0_56, %c38] : memref<4x648xf32, #tpu.memory_space<vmem>>, vector<4x286xf32>
    %c64 = arith.constant 64 : index
    %c0_57 = arith.constant 0 : index
    %47 = vector.load %arg6[%c64, %c0_57] : memref<72x572xf32, #tpu.memory_space<vmem>>, vector<4x286xf32>
    tpu.vector_store %arg6[%c64, %c0_57], %46 {strides = array<i32>} : memref<72x572xf32, #tpu.memory_space<vmem>>, vector<4x286xf32>,
    %c0_58 = arith.constant 0 : index
    %c362 = arith.constant 362 : index
    %48 = vector.load %arg7[%c0_58, %c362] : memref<4x648xf32, #tpu.memory_space<vmem>>, vector<4x286xf32>
    %c64_59 = arith.constant 64 : index
    %c286_60 = arith.constant 286 : index
    %49 = vector.load %arg6[%c64_59, %c286_60] : memref<72x572xf32, #tpu.memory_space<vmem>>, vector<4x286xf32>
    tpu.vector_store %arg6[%c64_59, %c286_60], %48 {strides = array<i32>} : memref<72x572xf32, #tpu.memory_space<vmem>>, vector<4x286xf32>,
    %c0_61 = arith.constant 0 : index
    %c0_62 = arith.constant 0 : index
    %50 = vector.load %arg2[%c0_61, %c0_62] : memref<4x72xf32, #tpu.memory_space<vmem>>, vector<4x72xf32>
    %c0_63 = arith.constant 0 : index
    %c0_64 = arith.constant 0 : index
    %51 = vector.load %arg6[%c0_63, %c0_64] : memref<72x572xf32, #tpu.memory_space<vmem>>, vector<72x572xf32>
    %cst_65 = arith.constant dense<0.000000e+00> : vector<4x572xf32>
    %52 = tpu.matmul %50, %51, %cst_65 {dimension_numbers = #tpu.dot_dimension_numbers<[1], [0], [0], [1], [0, 0, 1, 1], [], []>} : vector<4x72xf32>, vector<72x572xf32>, vector<4x572xf32> -> vector<4x572xf32>
    %cst_66 = arith.constant 0.000000e+00 : f32
    %53 = vector.broadcast %cst_66 : f32 to vector<4x572xf32>
    %54 = arith.maximumf %52, %53 : vector<4x572xf32>
    %c0_67 = arith.constant 0 : index
    %c0_68 = arith.constant 0 : index
    %55 = vector.load %arg4[%c0_67, %c0_68] : memref<1x572xf32, #tpu.memory_space<vmem>>, vector<1x572xf32>
    %56 = vector.broadcast %55 : vector<1x572xf32> to vector<4x572xf32>
    %57 = arith.mulf %54, %56 : vector<4x572xf32>
    %58 = vector.extract_strided_slice %57 {offsets = [0, 0], sizes = [4, 286], strides = [1, 1]} : vector<4x572xf32> to vector<4x286xf32>
    %c0_69 = arith.constant 0 : index
    %c19_70 = arith.constant 19 : index
    %59 = vector.load %arg7[%c0_69, %c19_70] : memref<4x648xf32, #tpu.memory_space<vmem>>, vector<4x286xf32>
    tpu.vector_store %arg7[%c0_69, %c19_70], %58 {strides = array<i32>} : memref<4x648xf32, #tpu.memory_space<vmem>>, vector<4x286xf32>,
    %60 = vector.extract_strided_slice %57 {offsets = [0, 286], sizes = [4, 286], strides = [1, 1]} : vector<4x572xf32> to vector<4x286xf32>
    %c0_71 = arith.constant 0 : index
    %c343_72 = arith.constant 343 : index
    %61 = vector.load %arg7[%c0_71, %c343_72] : memref<4x648xf32, #tpu.memory_space<vmem>>, vector<4x286xf32>
    tpu.vector_store %arg7[%c0_71, %c343_72], %60 {strides = array<i32>} : memref<4x648xf32, #tpu.memory_space<vmem>>, vector<4x286xf32>,
    %c0_73 = arith.constant 0 : index
    %c0_74 = arith.constant 0 : index
    %62 = vector.load %arg7[%c0_73, %c0_74] : memref<4x648xf32, #tpu.memory_space<vmem>>, vector<4x286xf32>
    %c0_75 = arith.constant 0 : index
    %c0_76 = arith.constant 0 : index
    %63 = vector.load %arg6[%c0_75, %c0_76] : memref<72x572xf32, #tpu.memory_space<vmem>>, vector<4x286xf32>
    tpu.vector_store %arg6[%c0_75, %c0_76], %62 {strides = array<i32>} : memref<72x572xf32, #tpu.memory_space<vmem>>, vector<4x286xf32>,
    %c0_77 = arith.constant 0 : index
    %c324_78 = arith.constant 324 : index
    %64 = vector.load %arg7[%c0_77, %c324_78] : memref<4x648xf32, #tpu.memory_space<vmem>>, vector<4x286xf32>
    %c0_79 = arith.constant 0 : index
    %c286_80 = arith.constant 286 : index
    %65 = vector.load %arg6[%c0_79, %c286_80] : memref<72x572xf32, #tpu.memory_space<vmem>>, vector<4x286xf32>
    tpu.vector_store %arg6[%c0_79, %c286_80], %64 {strides = array<i32>} : memref<72x572xf32, #tpu.memory_space<vmem>>, vector<4x286xf32>,
    %c0_81 = arith.constant 0 : index
    %c1_82 = arith.constant 1 : index
    %66 = vector.load %arg7[%c0_81, %c1_82] : memref<4x648xf32, #tpu.memory_space<vmem>>, vector<4x286xf32>
    %c8_83 = arith.constant 8 : index
    %c0_84 = arith.constant 0 : index
    %67 = vector.load %arg6[%c8_83, %c0_84] : memref<72x572xf32, #tpu.memory_space<vmem>>, vector<4x286xf32>
    tpu.vector_store %arg6[%c8_83, %c0_84], %66 {strides = array<i32>} : memref<72x572xf32, #tpu.memory_space<vmem>>, vector<4x286xf32>,
    %c0_85 = arith.constant 0 : index
    %c325_86 = arith.constant 325 : index
    %68 = vector.load %arg7[%c0_85, %c325_86] : memref<4x648xf32, #tpu.memory_space<vmem>>, vector<4x286xf32>
    %c8_87 = arith.constant 8 : index
    %c286_88 = arith.constant 286 : index
    %69 = vector.load %arg6[%c8_87, %c286_88] : memref<72x572xf32, #tpu.memory_space<vmem>>, vector<4x286xf32>
    tpu.vector_store %arg6[%c8_87, %c286_88], %68 {strides = array<i32>} : memref<72x572xf32, #tpu.memory_space<vmem>>, vector<4x286xf32>,
    %c0_89 = arith.constant 0 : index
    %c2_90 = arith.constant 2 : index
    %70 = vector.load %arg7[%c0_89, %c2_90] : memref<4x648xf32, #tpu.memory_space<vmem>>, vector<4x286xf32>
    %c16_91 = arith.constant 16 : index
    %c0_92 = arith.constant 0 : index
    %71 = vector.load %arg6[%c16_91, %c0_92] : memref<72x572xf32, #tpu.memory_space<vmem>>, vector<4x286xf32>
    tpu.vector_store %arg6[%c16_91, %c0_92], %70 {strides = array<i32>} : memref<72x572xf32, #tpu.memory_space<vmem>>, vector<4x286xf32>,
    %c0_93 = arith.constant 0 : index
    %c326_94 = arith.constant 326 : index
    %72 = vector.load %arg7[%c0_93, %c326_94] : memref<4x648xf32, #tpu.memory_space<vmem>>, vector<4x286xf32>
    %c16_95 = arith.constant 16 : index
    %c286_96 = arith.constant 286 : index
    %73 = vector.load %arg6[%c16_95, %c286_96] : memref<72x572xf32, #tpu.memory_space<vmem>>, vector<4x286xf32>
    tpu.vector_store %arg6[%c16_95, %c286_96], %72 {strides = array<i32>} : memref<72x572xf32, #tpu.memory_space<vmem>>, vector<4x286xf32>,
    %c0_97 = arith.constant 0 : index
    %c18_98 = arith.constant 18 : index
    %74 = vector.load %arg7[%c0_97, %c18_98] : memref<4x648xf32, #tpu.memory_space<vmem>>, vector<4x286xf32>
    %c24_99 = arith.constant 24 : index
    %c0_100 = arith.constant 0 : index
    %75 = vector.load %arg6[%c24_99, %c0_100] : memref<72x572xf32, #tpu.memory_space<vmem>>, vector<4x286xf32>
    tpu.vector_store %arg6[%c24_99, %c0_100], %74 {strides = array<i32>} : memref<72x572xf32, #tpu.memory_space<vmem>>, vector<4x286xf32>,
    %c0_101 = arith.constant 0 : index
    %c342_102 = arith.constant 342 : index
    %76 = vector.load %arg7[%c0_101, %c342_102] : memref<4x648xf32, #tpu.memory_space<vmem>>, vector<4x286xf32>
    %c24_103 = arith.constant 24 : index
    %c286_104 = arith.constant 286 : index
    %77 = vector.load %arg6[%c24_103, %c286_104] : memref<72x572xf32, #tpu.memory_space<vmem>>, vector<4x286xf32>
    tpu.vector_store %arg6[%c24_103, %c286_104], %76 {strides = array<i32>} : memref<72x572xf32, #tpu.memory_space<vmem>>, vector<4x286xf32>,
    %c0_105 = arith.constant 0 : index
    %c19_106 = arith.constant 19 : index
    %78 = vector.load %arg7[%c0_105, %c19_106] : memref<4x648xf32, #tpu.memory_space<vmem>>, vector<4x286xf32>
    %c32_107 = arith.constant 32 : index
    %c0_108 = arith.constant 0 : index
    %79 = vector.load %arg6[%c32_107, %c0_108] : memref<72x572xf32, #tpu.memory_space<vmem>>, vector<4x286xf32>
    tpu.vector_store %arg6[%c32_107, %c0_108], %78 {strides = array<i32>} : memref<72x572xf32, #tpu.memory_space<vmem>>, vector<4x286xf32>,
    %c0_109 = arith.constant 0 : index
    %c343_110 = arith.constant 343 : index
    %80 = vector.load %arg7[%c0_109, %c343_110] : memref<4x648xf32, #tpu.memory_space<vmem>>, vector<4x286xf32>
    %c32_111 = arith.constant 32 : index
    %c286_112 = arith.constant 286 : index
    %81 = vector.load %arg6[%c32_111, %c286_112] : memref<72x572xf32, #tpu.memory_space<vmem>>, vector<4x286xf32>
    tpu.vector_store %arg6[%c32_111, %c286_112], %80 {strides = array<i32>} : memref<72x572xf32, #tpu.memory_space<vmem>>, vector<4x286xf32>,
    %c0_113 = arith.constant 0 : index
    %c20_114 = arith.constant 20 : index
    %82 = vector.load %arg7[%c0_113, %c20_114] : memref<4x648xf32, #tpu.memory_space<vmem>>, vector<4x286xf32>
    %c40_115 = arith.constant 40 : index
    %c0_116 = arith.constant 0 : index
    %83 = vector.load %arg6[%c40_115, %c0_116] : memref<72x572xf32, #tpu.memory_space<vmem>>, vector<4x286xf32>
    tpu.vector_store %arg6[%c40_115, %c0_116], %82 {strides = array<i32>} : memref<72x572xf32, #tpu.memory_space<vmem>>, vector<4x286xf32>,
    %c0_117 = arith.constant 0 : index
    %c344_118 = arith.constant 344 : index
    %84 = vector.load %arg7[%c0_117, %c344_118] : memref<4x648xf32, #tpu.memory_space<vmem>>, vector<4x286xf32>
    %c40_119 = arith.constant 40 : index
    %c286_120 = arith.constant 286 : index
    %85 = vector.load %arg6[%c40_119, %c286_120] : memref<72x572xf32, #tpu.memory_space<vmem>>, vector<4x286xf32>
    tpu.vector_store %arg6[%c40_119, %c286_120], %84 {strides = array<i32>} : memref<72x572xf32, #tpu.memory_space<vmem>>, vector<4x286xf32>,
    %c0_121 = arith.constant 0 : index
    %c36_122 = arith.constant 36 : index
    %86 = vector.load %arg7[%c0_121, %c36_122] : memref<4x648xf32, #tpu.memory_space<vmem>>, vector<4x286xf32>
    %c48_123 = arith.constant 48 : index
    %c0_124 = arith.constant 0 : index
    %87 = vector.load %arg6[%c48_123, %c0_124] : memref<72x572xf32, #tpu.memory_space<vmem>>, vector<4x286xf32>
    tpu.vector_store %arg6[%c48_123, %c0_124], %86 {strides = array<i32>} : memref<72x572xf32, #tpu.memory_space<vmem>>, vector<4x286xf32>,
    %c0_125 = arith.constant 0 : index
    %c360_126 = arith.constant 360 : index
    %88 = vector.load %arg7[%c0_125, %c360_126] : memref<4x648xf32, #tpu.memory_space<vmem>>, vector<4x286xf32>
    %c48_127 = arith.constant 48 : index
    %c286_128 = arith.constant 286 : index
    %89 = vector.load %arg6[%c48_127, %c286_128] : memref<72x572xf32, #tpu.memory_space<vmem>>, vector<4x286xf32>
    tpu.vector_store %arg6[%c48_127, %c286_128], %88 {strides = array<i32>} : memref<72x572xf32, #tpu.memory_space<vmem>>, vector<4x286xf32>,
    %c0_129 = arith.constant 0 : index
    %c37_130 = arith.constant 37 : index
    %90 = vector.load %arg7[%c0_129, %c37_130] : memref<4x648xf32, #tpu.memory_space<vmem>>, vector<4x286xf32>
    %c56_131 = arith.constant 56 : index
    %c0_132 = arith.constant 0 : index
    %91 = vector.load %arg6[%c56_131, %c0_132] : memref<72x572xf32, #tpu.memory_space<vmem>>, vector<4x286xf32>
    tpu.vector_store %arg6[%c56_131, %c0_132], %90 {strides = array<i32>} : memref<72x572xf32, #tpu.memory_space<vmem>>, vector<4x286xf32>,
    %c0_133 = arith.constant 0 : index
    %c361_134 = arith.constant 361 : index
    %92 = vector.load %arg7[%c0_133, %c361_134] : memref<4x648xf32, #tpu.memory_space<vmem>>, vector<4x286xf32>
    %c56_135 = arith.constant 56 : index
    %c286_136 = arith.constant 286 : index
    %93 = vector.load %arg6[%c56_135, %c286_136] : memref<72x572xf32, #tpu.memory_space<vmem>>, vector<4x286xf32>
    tpu.vector_store %arg6[%c56_135, %c286_136], %92 {strides = array<i32>} : memref<72x572xf32, #tpu.memory_space<vmem>>, vector<4x286xf32>,
    %c0_137 = arith.constant 0 : index
    %c38_138 = arith.constant 38 : index
    %94 = vector.load %arg7[%c0_137, %c38_138] : memref<4x648xf32, #tpu.memory_space<vmem>>, vector<4x286xf32>
    %c64_139 = arith.constant 64 : index
    %c0_140 = arith.constant 0 : index
    %95 = vector.load %arg6[%c64_139, %c0_140] : memref<72x572xf32, #tpu.memory_space<vmem>>, vector<4x286xf32>
    tpu.vector_store %arg6[%c64_139, %c0_140], %94 {strides = array<i32>} : memref<72x572xf32, #tpu.memory_space<vmem>>, vector<4x286xf32>,
    %c0_141 = arith.constant 0 : index
    %c362_142 = arith.constant 362 : index
    %96 = vector.load %arg7[%c0_141, %c362_142] : memref<4x648xf32, #tpu.memory_space<vmem>>, vector<4x286xf32>
    %c64_143 = arith.constant 64 : index
    %c286_144 = arith.constant 286 : index
    %97 = vector.load %arg6[%c64_143, %c286_144] : memref<72x572xf32, #tpu.memory_space<vmem>>, vector<4x286xf32>
    tpu.vector_store %arg6[%c64_143, %c286_144], %96 {strides = array<i32>} : memref<72x572xf32, #tpu.memory_space<vmem>>, vector<4x286xf32>,
    %c0_145 = arith.constant 0 : index
    %c0_146 = arith.constant 0 : index
    %98 = vector.load %arg3[%c0_145, %c0_146] : memref<4x72xf32, #tpu.memory_space<vmem>>, vector<4x72xf32>
    %c0_147 = arith.constant 0 : index
    %c0_148 = arith.constant 0 : index
    %99 = vector.load %arg6[%c0_147, %c0_148] : memref<72x572xf32, #tpu.memory_space<vmem>>, vector<72x572xf32>
    %cst_149 = arith.constant dense<0.000000e+00> : vector<4x572xf32>
    %100 = tpu.matmul %98, %99, %cst_149 {dimension_numbers = #tpu.dot_dimension_numbers<[1], [0], [0], [1], [0, 0, 1, 1], [], []>} : vector<4x72xf32>, vector<72x572xf32>, vector<4x572xf32> -> vector<4x572xf32>
    %c0_150 = arith.constant 0 : index
    %c0_151 = arith.constant 0 : index
    %c0_152 = arith.constant 0 : index
    %101 = vector.load %arg1[%c0_150, %c0_151, %c0_152] : memref<2x4x324xf32, #tpu.memory_space<vmem>>, vector<1x4x324xf32>
    %102 = vector.shape_cast %101 : vector<1x4x324xf32> to vector<4x324xf32>
    %103 = vector.extract_strided_slice %100 {offsets = [0, 0], sizes = [4, 286], strides = [1, 1]} : vector<4x572xf32> to vector<4x286xf32>
    %104 = vector.extract_strided_slice %102 {offsets = [0, 19], sizes = [4, 286], strides = [1, 1]} : vector<4x324xf32> to vector<4x286xf32>
    %105 = arith.addf %103, %104 : vector<4x286xf32>
    %c0_153 = arith.constant 0 : index
    %c0_154 = arith.constant 0 : index
    %c19_155 = arith.constant 19 : index
    %106 = vector.load %arg5[%c0_153, %c0_154, %c19_155] : memref<2x4x324xf32, #tpu.memory_space<vmem>>, vector<1x4x286xf32>
    %107 = vector.shape_cast %106 : vector<1x4x286xf32> to vector<4x286xf32>
    %108 = vector.shape_cast %105 : vector<4x286xf32> to vector<1x4x286xf32>
    tpu.vector_store %arg5[%c0_153, %c0_154, %c19_155], %108 {strides = array<i32>} : memref<2x4x324xf32, #tpu.memory_space<vmem>>, vector<1x4x286xf32>,
    %c1_156 = arith.constant 1 : index
    %c0_157 = arith.constant 0 : index
    %c0_158 = arith.constant 0 : index
    %109 = vector.load %arg1[%c1_156, %c0_157, %c0_158] : memref<2x4x324xf32, #tpu.memory_space<vmem>>, vector<1x4x324xf32>
    %110 = vector.shape_cast %109 : vector<1x4x324xf32> to vector<4x324xf32>
    %111 = vector.extract_strided_slice %100 {offsets = [0, 286], sizes = [4, 286], strides = [1, 1]} : vector<4x572xf32> to vector<4x286xf32>
    %112 = vector.extract_strided_slice %110 {offsets = [0, 19], sizes = [4, 286], strides = [1, 1]} : vector<4x324xf32> to vector<4x286xf32>
    %113 = arith.addf %111, %112 : vector<4x286xf32>
    %c1_159 = arith.constant 1 : index
    %c0_160 = arith.constant 0 : index
    %c19_161 = arith.constant 19 : index
    %114 = vector.load %arg5[%c1_159, %c0_160, %c19_161] : memref<2x4x324xf32, #tpu.memory_space<vmem>>, vector<1x4x286xf32>
    %115 = vector.shape_cast %114 : vector<1x4x286xf32> to vector<4x286xf32>
    %116 = vector.shape_cast %113 : vector<4x286xf32> to vector<1x4x286xf32>
    tpu.vector_store %arg5[%c1_159, %c0_160, %c19_161], %116 {strides = array<i32>} : memref<2x4x324xf32, #tpu.memory_space<vmem>>, vector<1x4x286xf32>,
    return
  }
  func.func @transform_0(%arg0: i32) -> (i32, i32, i32) {
    %c0_i32 = arith.constant 0 : i32
    %c0_i32_0 = arith.constant 0 : i32
    %c0_i32_1 = arith.constant 0 : i32
    return %arg0, %c0_i32, %c0_i32_0 : i32, i32, i32
  }
  func.func @transform_1(%arg0: i32) -> (i32, i32) {
    %c0_i32 = arith.constant 0 : i32
    %c0_i32_0 = arith.constant 0 : i32
    %c0_i32_1 = arith.constant 0 : i32
    return %c0_i32, %c0_i32_0 : i32, i32
  }
  func.func @transform_2(%arg0: i32) -> (i32, i32) {
    %c0_i32 = arith.constant 0 : i32
    %c0_i32_0 = arith.constant 0 : i32
    %c0_i32_1 = arith.constant 0 : i32
    return %c0_i32, %c0_i32_0 : i32, i32
  }
  func.func @transform_3(%arg0: i32) -> (i32, i32) {
    %c0_i32 = arith.constant 0 : i32
    %c0_i32_0 = arith.constant 0 : i32
    %c0_i32_1 = arith.constant 0 : i32
    return %c0_i32, %c0_i32_0 : i32, i32
  }
  func.func @transform_4(%arg0: i32) -> (i32, i32, i32) {
    %c0_i32 = arith.constant 0 : i32
    %c0_i32_0 = arith.constant 0 : i32
    %c0_i32_1 = arith.constant 0 : i32
    return %arg0, %c0_i32, %c0_i32_0 : i32, i32, i32
  }
}

</mosaic_0001>

<llo_original>
// kernel: tpu_custom_call.1
$region0: #{tpu_custom_call.1}
  #allocation0 [shape = 'u32[]', space=smem, size = 0x4, offset = 0x4, fixed_abs, tag = 'smem constant byte address 0x4 - core index']
  #allocation1 [shape = 'u32[72,128]{1,0:T(1,128)}', space=vmem, size = 0x9000, scoped, tag = 'internal scratch']
  #allocation2 [shape = 'f32[72,572]{1,0:T(8,128)}', space=vmem, size = 0x2d000, scoped, tag = 'scratch operand']
  #allocation3 [shape = 'f32[4,648]{1,0:T(4,128)}', space=vmem, size = 0x3000, scoped, tag = 'scratch operand']
  %s0 = inlined_call_operand.hbm [shape: f32[2,4,324], index: 0, kind: input, shape index: {}]
  %s1 = inlined_call_operand.hbm [shape: f32[4,72], index: 1, kind: input, shape index: {}]
  %s2 = inlined_call_operand.hbm [shape: f32[4,72], index: 2, kind: input, shape index: {}]
  %s3 = inlined_call_operand.hbm [shape: f32[1,572], index: 3, kind: input, shape index: {}]
  %s4 = inlined_call_operand.hbm [shape: f32[2,4,324], index: 4, kind: output, shape index: {}]
  %s5 = sld [smem:[#allocation0]]
  $region42: #{tpu_custom_call.1} parent=0
    _
  %s7 = ssub.s32 1, %s5
  %s8 = scalar_select 0, %s7, %s5
  $region1: #{tpu_custom_call.1} parent=0
    #allocation4 [shape = 'u8[12288]{0}', space=vmem, size = 0x3000, scoped, tag = 'input window, operand 0, single buffered']
    #allocation5 [shape = 's32[1]{0}', space=sflag, size = 0x4, scoped, tag = 'scoped memory for tpu_custom_call.1']
    #allocation6 [shape = 's32[1]{0}', space=sflag, size = 0x4, scoped, tag = 'scoped memory for tpu_custom_call.1']
    #allocation7 [shape = 'u8[2048]{0}', space=vmem, size = 0x800, scoped, tag = 'input window, operand 1, single buffered']
    #allocation8 [shape = 's32[1]{0}', space=sflag, size = 0x4, scoped, tag = 'scoped memory for tpu_custom_call.1']
    #allocation9 [shape = 'u8[2048]{0}', space=vmem, size = 0x800, scoped, tag = 'input window, operand 2, single buffered']
    #allocation10 [shape = 'u8[2560]{0}', space=vmem, size = 0xc00, scoped, tag = 'input window, operand 3, single buffered']
    #allocation11 [shape = 's32[1]{0}', space=sflag, size = 0x4, scoped, tag = 'scoped memory for tpu_custom_call.1']
    #allocation12 [shape = 'u8[12288]{0}', space=vmem, size = 0x3000, scoped, tag = 'output window, operand 0, single buffered']
    %9 = vsyncpa [#allocation5], 0
    %10 = vsyncpa [#allocation8], 0
    %11 = vsyncpa [#allocation11], 0
    %12 = vsyncpa [#allocation6], 0
    // Predicated region
    $region2: #{tpu_custom_call.1} parent=1 // pred_check
      _
    $region3: #{tpu_custom_call.1} parent=1 // pred_check_branch
      %14 = sbr.rel (0) target = $region5
    $region4: #{tpu_custom_call.1} parent=1 // pred_region
      %16 = vsyncadd [#allocation5], 0
      %s17 = sshll.u32 %s0, 4
      %s18 = int_to_ptr.hbm [resolvable:$true] %s17
      %s19 = sshll.u32 [#allocation4], 4
      %s20 = int_to_ptr.vmem [resolvable:$true] %s19
      %25 = dma.hbm_to_vmem [thread:$0]  %s18, 384, %s20, [#allocation5], 192, 192, 12
    $region5: #{tpu_custom_call.1} parent=1 // pred_fallthru
      _
    // Predicated region
    $region6: #{tpu_custom_call.1} parent=1 // pred_check
      _
    $region7: #{tpu_custom_call.1} parent=1 // pred_check_branch
      %27 = sbr.rel (0) target = $region9
    $region8: #{tpu_custom_call.1} parent=1 // pred_region
      %29 = vsyncadd [#allocation8], 0
      %s31 = sshll.u32 %s1, 4
      %s32 = int_to_ptr.hbm [resolvable:$true] %s31
      %s33 = sshll.u32 [#allocation7], 4
      %s34 = int_to_ptr.vmem [resolvable:$true] %s33
      %36 = dma.hbm_to_vmem [thread:$0]  %s32, 64, %s34, [#allocation8]
    $region9: #{tpu_custom_call.1} parent=1 // pred_fallthru
      _
    // Predicated region
    $region10: #{tpu_custom_call.1} parent=1 // pred_check
      _
    $region11: #{tpu_custom_call.1} parent=1 // pred_check_branch
      %38 = sbr.rel (0) target = $region13
    $region12: #{tpu_custom_call.1} parent=1 // pred_region
      %40 = vsyncadd [#allocation8], 0
      %s42 = sshll.u32 %s2, 4
      %s43 = int_to_ptr.hbm [resolvable:$true] %s42
      %s44 = sshll.u32 [#allocation9], 4
      %s45 = int_to_ptr.vmem [resolvable:$true] %s44
      %47 = dma.hbm_to_vmem [thread:$0]  %s43, 64, %s45, [#allocation8]
    $region13: #{tpu_custom_call.1} parent=1 // pred_fallthru
      _
    // Predicated region
    $region14: #{tpu_custom_call.1} parent=1 // pred_check
      _
    $region15: #{tpu_custom_call.1} parent=1 // pred_check_branch
      %49 = sbr.rel (0) target = $region17
    $region16: #{tpu_custom_call.1} parent=1 // pred_region
      %51 = vsyncadd [#allocation11], 0
      %s53 = sshll.u32 %s3, 4
      %s54 = int_to_ptr.hbm [resolvable:$true] %s53
      %s55 = sshll.u32 [#allocation10], 4
      %s56 = int_to_ptr.vmem [resolvable:$true] %s55
      %58 = dma.hbm_to_vmem [thread:$0]  %s54, 80, %s56, [#allocation11]
    $region17: #{tpu_custom_call.1} parent=1 // pred_fallthru
      _
    // Predicated region
    $region18: #{tpu_custom_call.1} parent=1 // pred_check
      _
    $region19: #{tpu_custom_call.1} parent=1 // pred_check_branch
      %60 = sbr.rel (0) target = $region21
    $region20: #{tpu_custom_call.1} parent=1 // pred_region
      %62 = dma.done [#allocation5], 384
    $region21: #{tpu_custom_call.1} parent=1 // pred_fallthru
      _
    // Predicated region
    $region22: #{tpu_custom_call.1} parent=1 // pred_check
      _
    $region23: #{tpu_custom_call.1} parent=1 // pred_check_branch
      %64 = sbr.rel (0) target = $region25
    $region24: #{tpu_custom_call.1} parent=1 // pred_region
      %66 = dma.done [#allocation8], 64
    $region25: #{tpu_custom_call.1} parent=1 // pred_fallthru
      _
    // Predicated region
    $region26: #{tpu_custom_call.1} parent=1 // pred_check
      _
    $region27: #{tpu_custom_call.1} parent=1 // pred_check_branch
      %68 = sbr.rel (0) target = $region29
    $region28: #{tpu_custom_call.1} parent=1 // pred_region
      %70 = dma.done [#allocation8], 64
    $region29: #{tpu_custom_call.1} parent=1 // pred_fallthru
      _
    // Predicated region
    $region30: #{tpu_custom_call.1} parent=1 // pred_check
      _
    $region31: #{tpu_custom_call.1} parent=1 // pred_check_branch
      %72 = sbr.rel (0) target = $region33
    $region32: #{tpu_custom_call.1} parent=1 // pred_region
      %74 = dma.done [#allocation11], 80
    $region33: #{tpu_custom_call.1} parent=1 // pred_fallthru
      _
    %75 = vst [vmem:[#allocation2] sm:$0xff] 0.0
    %76 = vst [vmem:[#allocation2 + $0x8] sm:$0xff] 0.0
    %77 = vst [vmem:[#allocation2 + $0x10] sm:$0xff] 0.0
    %78 = vst [vmem:[#allocation2 + $0x18] sm:$0xff] 0.0
    %vm79 = vcmask 490496
    %80 = vst.msk [vmem:[#allocation2 + $0x20] sm:$0xff] %vm79, 0.0
    %81 = vst [vmem:[#allocation2 + $0x28] sm:$0xff] 0.0
    %82 = vst [vmem:[#allocation2 + $0x30] sm:$0xff] 0.0
    %83 = vst [vmem:[#allocation2 + $0x38] sm:$0xff] 0.0
    %84 = vst [vmem:[#allocation2 + $0x40] sm:$0xff] 0.0
    %85 = vst.msk [vmem:[#allocation2 + $0x48] sm:$0xff] %vm79, 0.0
    %86 = vst [vmem:[#allocation2 + $0x50] sm:$0xff] 0.0
    %87 = vst [vmem:[#allocation2 + $0x58] sm:$0xff] 0.0
    %88 = vst [vmem:[#allocation2 + $0x60] sm:$0xff] 0.0
    %89 = vst [vmem:[#allocation2 + $0x68] sm:$0xff] 0.0
    %90 = vst.msk [vmem:[#allocation2 + $0x70] sm:$0xff] %vm79, 0.0
    %91 = vst [vmem:[#allocation2 + $0x78] sm:$0xff] 0.0
    %92 = vst [vmem:[#allocation2 + $0x80] sm:$0xff] 0.0
    %93 = vst [vmem:[#allocation2 + $0x88] sm:$0xff] 0.0
    %94 = vst [vmem:[#allocation2 + $0x90] sm:$0xff] 0.0
    %95 = vst.msk [vmem:[#allocation2 + $0x98] sm:$0xff] %vm79, 0.0
    %96 = vst [vmem:[#allocation2 + $0xa0] sm:$0xff] 0.0
    %97 = vst [vmem:[#allocation2 + $0xa8] sm:$0xff] 0.0
    %98 = vst [vmem:[#allocation2 + $0xb0] sm:$0xff] 0.0
    %99 = vst [vmem:[#allocation2 + $0xb8] sm:$0xff] 0.0
    %100 = vst.msk [vmem:[#allocation2 + $0xc0] sm:$0xff] %vm79, 0.0
    %101 = vst [vmem:[#allocation2 + $0xc8] sm:$0xff] 0.0
    %102 = vst [vmem:[#allocation2 + $0xd0] sm:$0xff] 0.0
    %103 = vst [vmem:[#allocation2 + $0xd8] sm:$0xff] 0.0
    %104 = vst [vmem:[#allocation2 + $0xe0] sm:$0xff] 0.0
    %105 = vst.msk [vmem:[#allocation2 + $0xe8] sm:$0xff] %vm79, 0.0
    %106 = vst [vmem:[#allocation2 + $0xf0] sm:$0xff] 0.0
    %107 = vst [vmem:[#allocation2 + $0xf8] sm:$0xff] 0.0
    %108 = vst [vmem:[#allocation2 + $0x100] sm:$0xff] 0.0
    %109 = vst [vmem:[#allocation2 + $0x108] sm:$0xff] 0.0
    %110 = vst.msk [vmem:[#allocation2 + $0x110] sm:$0xff] %vm79, 0.0
    %111 = vst [vmem:[#allocation2 + $0x118] sm:$0xff] 0.0
    %112 = vst [vmem:[#allocation2 + $0x120] sm:$0xff] 0.0
    %113 = vst [vmem:[#allocation2 + $0x128] sm:$0xff] 0.0
    %114 = vst [vmem:[#allocation2 + $0x130] sm:$0xff] 0.0
    %115 = vst.msk [vmem:[#allocation2 + $0x138] sm:$0xff] %vm79, 0.0
    %116 = vst [vmem:[#allocation2 + $0x140] sm:$0xff] 0.0
    %117 = vst [vmem:[#allocation2 + $0x148] sm:$0xff] 0.0
    %118 = vst [vmem:[#allocation2 + $0x150] sm:$0xff] 0.0
    %119 = vst [vmem:[#allocation2 + $0x158] sm:$0xff] 0.0
    %120 = vst.msk [vmem:[#allocation2 + $0x160] sm:$0xff] %vm79, 0.0
    %v121 = vlaneseq
    %vm122 = vcmp.ge.s32.totalorder %v121, 0
    %vm123 = vcmp.lt.s32.totalorder %v121, 572
    %vm124 = vmand %vm122, %vm123
    %s125 = scalar_lea.vmem [#allocation2], 4
    %126 = vst.msk [vmem:[%s125] ss:$8 sm:$0xf] %vm124, 1.0
    %127 = vst.msk [vmem:[%s125] ss:$8 sm:$0x10] %vm124, 1.0
    %v128 = vld [vmem:[#allocation4] sm:$0xff]
    %v129 = vld [vmem:[#allocation4 + $0x8] sm:$0xf]
    %v130 = vmax.f32 %v128, 0.0
    %v131 = vmax.f32 %v129, 0.0
    %132 = vst [vmem:[#allocation3] sm:$0xff] %v130
    %vm133 = vcmask 551936
    %134 = vst.msk [vmem:[#allocation3 + $0x8] sm:$0xf] %vm133, %v131
    %s135 = scalar_lea.vmem [#allocation4], 12
    %v136 = vld [vmem:[%s135] sm:$0xff]
    %v137 = vld [vmem:[%s135 + $0x8] sm:$0xf]
    %v138 = vmax.f32 %v136, 0.0
    %v139 = vmax.f32 %v137, 0.0
    %142 = vrot.lane.b32.xlu0 %v138, 68
    %v143 = vpop.permute.xlu0 %142
    %144 = vrot.lane.b32.xlu0 %v139, 68
    %v145 = vpop.permute.xlu0 %144
    %v146 = vrot.slane %v143, 4
    %v147 = vrot.slane %v145, 4
    %vm148 = vcmask 556032
    %v149 = vsel %vm148, %v146, %v143
    %vm150 = vcmask 1043456
    %v151 = vsel %vm150, %v146, %v147
    %v152 = vsel %vm148, %v151, %v145
    %vm155 = vcmask 1044000
    %vm156 = vcmask 1047556
    %vm157 = vmor %vm156, %vm155
    %158 = vst.msk [vmem:[#allocation3 + $0x8] sm:$0xff] %vm157, %v149
    %vm159 = vcmask 64516
    %vm160 = vmor %vm159, %vm150
    %161 = vst.msk [vmem:[#allocation3 + $0x10] sm:$0xff] %vm160, %v152
    %v162 = vld [vmem:[#allocation3] sm:$0xff]
    %v163 = vld [vmem:[#allocation3 + $0x8] sm:$0xf]
    %166 = vst [vmem:[#allocation1] ss:$2 sm:$0xff] %v162
    %s167 = scalar_lea.vmem [#allocation1], 16
    %168 = vst [vmem:[%s167] ss:$2 sm:$0xff] %v163
    %v169 = vld.sshfl [vmem:[#allocation1] sm:$0xff pattern:$0x75316420]
    %v170 = vld.sshfl [vmem:[#allocation1 + $0x8] sm:$0xff pattern:$0x75316420]
    %v171 = vld.sshfl [vmem:[#allocation1 + $0x10] sm:$0xff pattern:$0x75316420]
    %175 = vst [vmem:[#allocation2] sm:$0xf] %v169
    %176 = vst [vmem:[#allocation2 + $0x8] sm:$0xf] %v170
    %vm177 = vcmask 240640
    %178 = vst.msk [vmem:[#allocation2 + $0x10] sm:$0xf] %vm177, %v171
    %v179 = vld [vmem:[#allocation3 + $0x8] sm:$0xff]
    %v180 = vld [vmem:[#allocation3 + $0x10] sm:$0xf]
    %183 = vst [vmem:[#allocation1] ss:$2 sm:$0xff] %v179
    %s184 = scalar_lea.vmem [#allocation1], 16
    %185 = vst [vmem:[%s184] ss:$2 sm:$0xff] %v180
    %v186 = vld.sshfl [vmem:[#allocation1] sm:$0xff pattern:$0x75316420]
    %v187 = vld.sshfl [vmem:[#allocation1 + $0x8] sm:$0xff pattern:$0x75316420]
    %v188 = vld.sshfl [vmem:[#allocation1 + $0x10] sm:$0xff pattern:$0x75316420]
    %189 = vrot.lane.b32.xlu0 %v186, 90
    %v190 = vpop.permute.xlu0 %189
    %191 = vrot.lane.b32.xlu0 %v187, 90
    %v192 = vpop.permute.xlu0 %191
    %193 = vrot.lane.b32.xlu0 %v188, 90
    %v194 = vpop.permute.xlu0 %193
    %vm195 = vcmask 736256
    %v196 = vsel %vm195, %v190, %v192
    %v197 = vsel %vm195, %v192, %v194
    %vm201 = vcmask 1043696
    %202 = vst.msk [vmem:[#allocation2 + $0x10] sm:$0xf] %vm201, %v196
    %203 = vst [vmem:[#allocation2 + $0x18] sm:$0xf] %v197
    %vm204 = vcmask 486400
    %205 = vst.msk [vmem:[#allocation2 + $0x20] sm:$0xf] %vm204, %v194
    %v206 = vld [vmem:[#allocation3] sm:$0xff]
    %v207 = vld [vmem:[#allocation3 + $0x8] sm:$0xf]
    %210 = vst [vmem:[#allocation1] ss:$2 sm:$0xff] %v206
    %s211 = scalar_lea.vmem [#allocation1], 16
    %212 = vst [vmem:[%s211] ss:$2 sm:$0xff] %v207
    %v213 = vld.sshfl [vmem:[#allocation1] sm:$0xff pattern:$0x75316420]
    %v214 = vld.sshfl [vmem:[#allocation1 + $0x8] sm:$0xff pattern:$0x75316420]
    %v215 = vld.sshfl [vmem:[#allocation1 + $0x10] sm:$0xff pattern:$0x75316420]
    %216 = vrot.lane.b32.xlu0 %v213, 127
    %v217 = vpop.permute.xlu0 %216
    %218 = vrot.lane.b32.xlu0 %v214, 127
    %v219 = vpop.permute.xlu0 %218
    %220 = vrot.lane.b32.xlu0 %v215, 127
    %v221 = vpop.permute.xlu0 %220
    %vm222 = vcmask 1039360
    %v223 = vsel %vm222, %v217, %v219
    %v224 = vsel %vm222, %v219, %v221
    %228 = vst [vmem:[#allocation2 + $0x28] sm:$0xf] %v223
    %229 = vst [vmem:[#allocation2 + $0x30] sm:$0xf] %v224
    %230 = vst.msk [vmem:[#allocation2 + $0x38] sm:$0xf] %vm177, %v221
    %v231 = vld [vmem:[#allocation3 + $0x8] sm:$0xff]
    %v232 = vld [vmem:[#allocation3 + $0x10] sm:$0xf]
    %235 = vst [vmem:[#allocation1] ss:$2 sm:$0xff] %v231
    %s236 = scalar_lea.vmem [#allocation1], 16
    %237 = vst [vmem:[%s236] ss:$2 sm:$0xff] %v232
    %v238 = vld.sshfl [vmem:[#allocation1] sm:$0xff pattern:$0x75316420]
    %v239 = vld.sshfl [vmem:[#allocation1 + $0x8] sm:$0xff pattern:$0x75316420]
    %v240 = vld.sshfl [vmem:[#allocation1 + $0x10] sm:$0xff pattern:$0x75316420]
    %241 = vrot.lane.b32.xlu0 %v238, 89
    %v242 = vpop.permute.xlu0 %241
    %243 = vrot.lane.b32.xlu0 %v239, 89
    %v244 = vpop.permute.xlu0 %243
    %245 = vrot.lane.b32.xlu0 %v240, 89
    %v246 = vpop.permute.xlu0 %245
    %vm247 = vcmask 728064
    %v248 = vsel %vm247, %v242, %v244
    %v249 = vsel %vm247, %v244, %v246
    %253 = vst.msk [vmem:[#allocation2 + $0x38] sm:$0xf] %vm201, %v248
    %254 = vst [vmem:[#allocation2 + $0x40] sm:$0xf] %v249
    %255 = vst.msk [vmem:[#allocation2 + $0x48] sm:$0xf] %vm204, %v246
    %v256 = vld [vmem:[#allocation3] sm:$0xff]
    %v257 = vld [vmem:[#allocation3 + $0x8] sm:$0xf]
    %260 = vst [vmem:[#allocation1] ss:$2 sm:$0xff] %v256
    %s261 = scalar_lea.vmem [#allocation1], 16
    %262 = vst [vmem:[%s261] ss:$2 sm:$0xff] %v257
    %v263 = vld.sshfl [vmem:[#allocation1] sm:$0xff pattern:$0x75316420]
    %v264 = vld.sshfl [vmem:[#allocation1 + $0x8] sm:$0xff pattern:$0x75316420]
    %v265 = vld.sshfl [vmem:[#allocation1 + $0x10] sm:$0xff pattern:$0x75316420]
    %266 = vrot.lane.b32.xlu0 %v263, 126
    %v267 = vpop.permute.xlu0 %266
    %268 = vrot.lane.b32.xlu0 %v264, 126
    %v269 = vpop.permute.xlu0 %268
    %270 = vrot.lane.b32.xlu0 %v265, 126
    %v271 = vpop.permute.xlu0 %270
    %vm272 = vcmask 1031168
    %v273 = vsel %vm272, %v267, %v269
    %v274 = vsel %vm272, %v269, %v271
    %278 = vst [vmem:[#allocation2 + $0x50] sm:$0xf] %v273
    %279 = vst [vmem:[#allocation2 + $0x58] sm:$0xf] %v274
    %280 = vst.msk [vmem:[#allocation2 + $0x60] sm:$0xf] %vm177, %v271
    %v281 = vld [vmem:[#allocation3 + $0x8] sm:$0xff]
    %v282 = vld [vmem:[#allocation3 + $0x10] sm:$0xf]
    %285 = vst [vmem:[#allocation1] ss:$2 sm:$0xff] %v281
    %s286 = scalar_lea.vmem [#allocation1], 16
    %287 = vst [vmem:[%s286] ss:$2 sm:$0xff] %v282
    %v288 = vld.sshfl [vmem:[#allocation1] sm:$0xff pattern:$0x75316420]
    %v289 = vld.sshfl [vmem:[#allocation1 + $0x8] sm:$0xff pattern:$0x75316420]
    %v290 = vld.sshfl [vmem:[#allocation1 + $0x10] sm:$0xff pattern:$0x75316420]
    %291 = vrot.lane.b32.xlu0 %v288, 88
    %v292 = vpop.permute.xlu0 %291
    %293 = vrot.lane.b32.xlu0 %v289, 88
    %v294 = vpop.permute.xlu0 %293
    %295 = vrot.lane.b32.xlu0 %v290, 88
    %v296 = vpop.permute.xlu0 %295
    %vm297 = vcmask 719872
    %v298 = vsel %vm297, %v292, %v294
    %v299 = vsel %vm297, %v294, %v296
    %303 = vst.msk [vmem:[#allocation2 + $0x60] sm:$0xf] %vm201, %v298
    %304 = vst [vmem:[#allocation2 + $0x68] sm:$0xf] %v299
    %305 = vst.msk [vmem:[#allocation2 + $0x70] sm:$0xf] %vm204, %v296
    %v306 = vld [vmem:[#allocation3] sm:$0xff]
    %v307 = vld [vmem:[#allocation3 + $0x8] sm:$0xf]
    %310 = vst [vmem:[#allocation1] ss:$2 sm:$0xff] %v306
    %s311 = scalar_lea.vmem [#allocation1], 16
    %312 = vst [vmem:[%s311] ss:$2 sm:$0xff] %v307
    %v313 = vld.sshfl [vmem:[#allocation1] sm:$0xff pattern:$0x75316420]
    %v314 = vld.sshfl [vmem:[#allocation1 + $0x8] sm:$0xff pattern:$0x75316420]
    %v315 = vld.sshfl [vmem:[#allocation1 + $0x10] sm:$0xff pattern:$0x75316420]
    %316 = vrot.lane.b32.xlu0 %v313, 110
    %v317 = vpop.permute.xlu0 %316
    %318 = vrot.lane.b32.xlu0 %v314, 110
    %v319 = vpop.permute.xlu0 %318
    %320 = vrot.lane.b32.xlu0 %v315, 110
    %v321 = vpop.permute.xlu0 %320
    %vm322 = vcmask 900096
    %v323 = vsel %vm322, %v317, %v319
    %v324 = vsel %vm322, %v319, %v321
    %328 = vst [vmem:[#allocation2 + $0x78] sm:$0xf] %v323
    %329 = vst [vmem:[#allocation2 + $0x80] sm:$0xf] %v324
    %330 = vst.msk [vmem:[#allocation2 + $0x88] sm:$0xf] %vm177, %v321
    %v331 = vld [vmem:[#allocation3 + $0x8] sm:$0xff]
    %v332 = vld [vmem:[#allocation3 + $0x10] sm:$0xf]
    %335 = vst [vmem:[#allocation1] ss:$2 sm:$0xff] %v331
    %s336 = scalar_lea.vmem [#allocation1], 16
    %337 = vst [vmem:[%s336] ss:$2 sm:$0xff] %v332
    %v338 = vld.sshfl [vmem:[#allocation1] sm:$0xff pattern:$0x75316420]
    %v339 = vld.sshfl [vmem:[#allocation1 + $0x8] sm:$0xff pattern:$0x75316420]
    %v340 = vld.sshfl [vmem:[#allocation1 + $0x10] sm:$0xff pattern:$0x75316420]
    %341 = vrot.lane.b32.xlu0 %v338, 72
    %v342 = vpop.permute.xlu0 %341
    %343 = vrot.lane.b32.xlu0 %v339, 72
    %v344 = vpop.permute.xlu0 %343
    %345 = vrot.lane.b32.xlu0 %v340, 72
    %v346 = vpop.permute.xlu0 %345
    %vm347 = vcmask 588800
    %v348 = vsel %vm347, %v342, %v344
    %v349 = vsel %vm347, %v344, %v346
    %353 = vst.msk [vmem:[#allocation2 + $0x88] sm:$0xf] %vm201, %v348
    %354 = vst [vmem:[#allocation2 + $0x90] sm:$0xf] %v349
    %355 = vst.msk [vmem:[#allocation2 + $0x98] sm:$0xf] %vm204, %v346
    %v356 = vld [vmem:[#allocation3] sm:$0xff]
    %v357 = vld [vmem:[#allocation3 + $0x8] sm:$0xf]
    %360 = vst [vmem:[#allocation1] ss:$2 sm:$0xff] %v356
    %s361 = scalar_lea.vmem [#allocation1], 16
    %362 = vst [vmem:[%s361] ss:$2 sm:$0xff] %v357
    %v363 = vld.sshfl [vmem:[#allocation1] sm:$0xff pattern:$0x75316420]
    %v364 = vld.sshfl [vmem:[#allocation1 + $0x8] sm:$0xff pattern:$0x75316420]
    %v365 = vld.sshfl [vmem:[#allocation1 + $0x10] sm:$0xff pattern:$0x75316420]
    %366 = vrot.lane.b32.xlu0 %v363, 109
    %v367 = vpop.permute.xlu0 %366
    %368 = vrot.lane.b32.xlu0 %v364, 109
    %v369 = vpop.permute.xlu0 %368
    %370 = vrot.lane.b32.xlu0 %v365, 109
    %v371 = vpop.permute.xlu0 %370
    %vm372 = vcmask 891904
    %v373 = vsel %vm372, %v367, %v369
    %v374 = vsel %vm372, %v369, %v371
    %378 = vst [vmem:[#allocation2 + $0xa0] sm:$0xf] %v373
    %379 = vst [vmem:[#allocation2 + $0xa8] sm:$0xf] %v374
    %380 = vst.msk [vmem:[#allocation2 + $0xb0] sm:$0xf] %vm177, %v371
    %v381 = vld [vmem:[#allocation3 + $0x8] sm:$0xff]
    %v382 = vld [vmem:[#allocation3 + $0x10] sm:$0xf]
    %385 = vst [vmem:[#allocation1] ss:$2 sm:$0xff] %v381
    %s386 = scalar_lea.vmem [#allocation1], 16
    %387 = vst [vmem:[%s386] ss:$2 sm:$0xff] %v382
    %v388 = vld.sshfl [vmem:[#allocation1] sm:$0xff pattern:$0x75316420]
    %v389 = vld.sshfl [vmem:[#allocation1 + $0x8] sm:$0xff pattern:$0x75316420]
    %v390 = vld.sshfl [vmem:[#allocation1 + $0x10] sm:$0xff pattern:$0x75316420]
    %391 = vrot.lane.b32.xlu0 %v388, 71
    %v392 = vpop.permute.xlu0 %391
    %393 = vrot.lane.b32.xlu0 %v389, 71
    %v394 = vpop.permute.xlu0 %393
    %395 = vrot.lane.b32.xlu0 %v390, 71
    %v396 = vpop.permute.xlu0 %395
    %vm397 = vcmask 580608
    %v398 = vsel %vm397, %v392, %v394
    %v399 = vsel %vm397, %v394, %v396
    %403 = vst.msk [vmem:[#allocation2 + $0xb0] sm:$0xf] %vm201, %v398
    %404 = vst [vmem:[#allocation2 + $0xb8] sm:$0xf] %v399
    %405 = vst.msk [vmem:[#allocation2 + $0xc0] sm:$0xf] %vm204, %v396
    %v406 = vld [vmem:[#allocation3] sm:$0xff]
    %v407 = vld [vmem:[#allocation3 + $0x8] sm:$0xf]
    %410 = vst [vmem:[#allocation1] ss:$2 sm:$0xff] %v406
    %s411 = scalar_lea.vmem [#allocation1], 16
    %412 = vst [vmem:[%s411] ss:$2 sm:$0xff] %v407
    %v413 = vld.sshfl [vmem:[#allocation1] sm:$0xff pattern:$0x75316420]
    %v414 = vld.sshfl [vmem:[#allocation1 + $0x8] sm:$0xff pattern:$0x75316420]
    %v415 = vld.sshfl [vmem:[#allocation1 + $0x10] sm:$0xff pattern:$0x75316420]
    %416 = vrot.lane.b32.xlu0 %v413, 108
    %v417 = vpop.permute.xlu0 %416
    %418 = vrot.lane.b32.xlu0 %v414, 108
    %v419 = vpop.permute.xlu0 %418
    %420 = vrot.lane.b32.xlu0 %v415, 108
    %v421 = vpop.permute.xlu0 %420
    %vm422 = vcmask 883712
    %v423 = vsel %vm422, %v417, %v419
    %v424 = vsel %vm422, %v419, %v421
    %428 = vst [vmem:[#allocation2 + $0xc8] sm:$0xf] %v423
    %429 = vst [vmem:[#allocation2 + $0xd0] sm:$0xf] %v424
    %430 = vst.msk [vmem:[#allocation2 + $0xd8] sm:$0xf] %vm177, %v421
    %v431 = vld [vmem:[#allocation3 + $0x8] sm:$0xff]
    %v432 = vld [vmem:[#allocation3 + $0x10] sm:$0xf]
    %435 = vst [vmem:[#allocation1] ss:$2 sm:$0xff] %v431
    %s436 = scalar_lea.vmem [#allocation1], 16
    %437 = vst [vmem:[%s436] ss:$2 sm:$0xff] %v432
    %v438 = vld.sshfl [vmem:[#allocation1] sm:$0xff pattern:$0x75316420]
    %v439 = vld.sshfl [vmem:[#allocation1 + $0x8] sm:$0xff pattern:$0x75316420]
    %v440 = vld.sshfl [vmem:[#allocation1 + $0x10] sm:$0xff pattern:$0x75316420]
    %441 = vrot.lane.b32.xlu0 %v438, 70
    %v442 = vpop.permute.xlu0 %441
    %443 = vrot.lane.b32.xlu0 %v439, 70
    %v444 = vpop.permute.xlu0 %443
    %445 = vrot.lane.b32.xlu0 %v440, 70
    %v446 = vpop.permute.xlu0 %445
    %vm447 = vcmask 572416
    %v448 = vsel %vm447, %v442, %v444
    %v449 = vsel %vm447, %v444, %v446
    %453 = vst.msk [vmem:[#allocation2 + $0xd8] sm:$0xf] %vm201, %v448
    %454 = vst [vmem:[#allocation2 + $0xe0] sm:$0xf] %v449
    %455 = vst.msk [vmem:[#allocation2 + $0xe8] sm:$0xf] %vm204, %v446
    %v456 = vld [vmem:[#allocation3] sm:$0xff]
    %v457 = vld [vmem:[#allocation3 + $0x8] sm:$0xf]
    %460 = vst [vmem:[#allocation1] ss:$2 sm:$0xff] %v456
    %s461 = scalar_lea.vmem [#allocation1], 16
    %462 = vst [vmem:[%s461] ss:$2 sm:$0xff] %v457
    %v463 = vld.sshfl [vmem:[#allocation1] sm:$0xff pattern:$0x75316420]
    %v464 = vld.sshfl [vmem:[#allocation1 + $0x8] sm:$0xff pattern:$0x75316420]
    %v465 = vld.sshfl [vmem:[#allocation1 + $0x10] sm:$0xff pattern:$0x75316420]
    %466 = vrot.lane.b32.xlu0 %v463, 92
    %v467 = vpop.permute.xlu0 %466
    %468 = vrot.lane.b32.xlu0 %v464, 92
    %v469 = vpop.permute.xlu0 %468
    %470 = vrot.lane.b32.xlu0 %v465, 92
    %v471 = vpop.permute.xlu0 %470
    %vm472 = vcmask 752640
    %v473 = vsel %vm472, %v467, %v469
    %v474 = vsel %vm472, %v469, %v471
    %478 = vst [vmem:[#allocation2 + $0xf0] sm:$0xf] %v473
    %479 = vst [vmem:[#allocation2 + $0xf8] sm:$0xf] %v474
    %480 = vst.msk [vmem:[#allocation2 + $0x100] sm:$0xf] %vm177, %v471
    %v481 = vld [vmem:[#allocation3 + $0x8] sm:$0xff]
    %v482 = vld [vmem:[#allocation3 + $0x10] sm:$0xff]
    %485 = vst [vmem:[#allocation1] ss:$2 sm:$0xff] %v481
    %s486 = scalar_lea.vmem [#allocation1], 16
    %487 = vst [vmem:[%s486] ss:$2 sm:$0xff] %v482
    %v488 = vld.sshfl [vmem:[#allocation1] sm:$0xff pattern:$0x75316420]
    %v489 = vld.sshfl [vmem:[#allocation1 + $0x8] sm:$0xff pattern:$0x75316420]
    %v490 = vld.sshfl [vmem:[#allocation1 + $0x10] sm:$0xff pattern:$0x75316420]
    %v491 = vld.sshfl [vmem:[#allocation1 + $0x18] sm:$0xff pattern:$0x75316420]
    %492 = vrot.lane.b32.xlu0 %v488, 54
    %v493 = vpop.permute.xlu0 %492
    %494 = vrot.lane.b32.xlu0 %v489, 54
    %v495 = vpop.permute.xlu0 %494
    %496 = vrot.lane.b32.xlu0 %v490, 54
    %v497 = vpop.permute.xlu0 %496
    %498 = vrot.lane.b32.xlu0 %v491, 54
    %v499 = vpop.permute.xlu0 %498
    %vm500 = vcmask 441344
    %v501 = vsel %vm500, %v493, %v495
    %v502 = vsel %vm500, %v495, %v497
    %v503 = vsel %vm500, %v497, %v499
    %507 = vst.msk [vmem:[#allocation2 + $0x100] sm:$0xf] %vm201, %v501
    %508 = vst [vmem:[#allocation2 + $0x108] sm:$0xf] %v502
    %509 = vst.msk [vmem:[#allocation2 + $0x110] sm:$0xf] %vm204, %v503
    %v510 = vld [vmem:[#allocation3] sm:$0xff]
    %v511 = vld [vmem:[#allocation3 + $0x8] sm:$0xf]
    %514 = vst [vmem:[#allocation1] ss:$2 sm:$0xff] %v510
    %s515 = scalar_lea.vmem [#allocation1], 16
    %516 = vst [vmem:[%s515] ss:$2 sm:$0xff] %v511
    %v517 = vld.sshfl [vmem:[#allocation1] sm:$0xff pattern:$0x75316420]
    %v518 = vld.sshfl [vmem:[#allocation1 + $0x8] sm:$0xff pattern:$0x75316420]
    %v519 = vld.sshfl [vmem:[#allocation1 + $0x10] sm:$0xff pattern:$0x75316420]
    %520 = vrot.lane.b32.xlu0 %v517, 91
    %v521 = vpop.permute.xlu0 %520
    %522 = vrot.lane.b32.xlu0 %v518, 91
    %v523 = vpop.permute.xlu0 %522
    %524 = vrot.lane.b32.xlu0 %v519, 91
    %v525 = vpop.permute.xlu0 %524
    %vm526 = vcmask 744448
    %v527 = vsel %vm526, %v521, %v523
    %v528 = vsel %vm526, %v523, %v525
    %532 = vst [vmem:[#allocation2 + $0x118] sm:$0xf] %v527
    %533 = vst [vmem:[#allocation2 + $0x120] sm:$0xf] %v528
    %534 = vst.msk [vmem:[#allocation2 + $0x128] sm:$0xf] %vm177, %v525
    %v535 = vld [vmem:[#allocation3 + $0x8] sm:$0xff]
    %v536 = vld [vmem:[#allocation3 + $0x10] sm:$0xff]
    %539 = vst [vmem:[#allocation1] ss:$2 sm:$0xff] %v535
    %s540 = scalar_lea.vmem [#allocation1], 16
    %541 = vst [vmem:[%s540] ss:$2 sm:$0xff] %v536
    %v542 = vld.sshfl [vmem:[#allocation1] sm:$0xff pattern:$0x75316420]
    %v543 = vld.sshfl [vmem:[#allocation1 + $0x8] sm:$0xff pattern:$0x75316420]
    %v544 = vld.sshfl [vmem:[#allocation1 + $0x10] sm:$0xff pattern:$0x75316420]
    %v545 = vld.sshfl [vmem:[#allocation1 + $0x18] sm:$0xff pattern:$0x75316420]
    %546 = vrot.lane.b32.xlu0 %v542, 53
    %v547 = vpop.permute.xlu0 %546
    %548 = vrot.lane.b32.xlu0 %v543, 53
    %v549 = vpop.permute.xlu0 %548
    %550 = vrot.lane.b32.xlu0 %v544, 53
    %v551 = vpop.permute.xlu0 %550
    %552 = vrot.lane.b32.xlu0 %v545, 53
    %v553 = vpop.permute.xlu0 %552
    %vm554 = vcmask 433152
    %v555 = vsel %vm554, %v547, %v549
    %v556 = vsel %vm554, %v549, %v551
    %v557 = vsel %vm554, %v551, %v553
    %561 = vst.msk [vmem:[#allocation2 + $0x128] sm:$0xf] %vm201, %v555
    %562 = vst [vmem:[#allocation2 + $0x130] sm:$0xf] %v556
    %563 = vst.msk [vmem:[#allocation2 + $0x138] sm:$0xf] %vm204, %v557
    %v564 = vld [vmem:[#allocation3] sm:$0xff]
    %v565 = vld [vmem:[#allocation3 + $0x8] sm:$0xf]
    %568 = vst [vmem:[#allocation1] ss:$2 sm:$0xff] %v564
    %s569 = scalar_lea.vmem [#allocation1], 16
    %570 = vst [vmem:[%s569] ss:$2 sm:$0xff] %v565
    %v571 = vld.sshfl [vmem:[#allocation1] sm:$0xff pattern:$0x75316420]
    %v572 = vld.sshfl [vmem:[#allocation1 + $0x8] sm:$0xff pattern:$0x75316420]
    %v573 = vld.sshfl [vmem:[#allocation1 + $0x10] sm:$0xff pattern:$0x75316420]
    %574 = vrot.lane.b32.xlu0 %v571, 90
    %v575 = vpop.permute.xlu0 %574
    %576 = vrot.lane.b32.xlu0 %v572, 90
    %v577 = vpop.permute.xlu0 %576
    %578 = vrot.lane.b32.xlu0 %v573, 90
    %v579 = vpop.permute.xlu0 %578
    %v580 = vsel %vm195, %v575, %v577
    %v581 = vsel %vm195, %v577, %v579
    %585 = vst [vmem:[#allocation2 + $0x140] sm:$0xf] %v580
    %586 = vst [vmem:[#allocation2 + $0x148] sm:$0xf] %v581
    %587 = vst.msk [vmem:[#allocation2 + $0x150] sm:$0xf] %vm177, %v579
    %v588 = vld [vmem:[#allocation3 + $0x8] sm:$0xff]
    %v589 = vld [vmem:[#allocation3 + $0x10] sm:$0xff]
    %592 = vst [vmem:[#allocation1] ss:$2 sm:$0xff] %v588
    %s593 = scalar_lea.vmem [#allocation1], 16
    %594 = vst [vmem:[%s593] ss:$2 sm:$0xff] %v589
    %v595 = vld.sshfl [vmem:[#allocation1] sm:$0xff pattern:$0x75316420]
    %v596 = vld.sshfl [vmem:[#allocation1 + $0x8] sm:$0xff pattern:$0x75316420]
    %v597 = vld.sshfl [vmem:[#allocation1 + $0x10] sm:$0xff pattern:$0x75316420]
    %v598 = vld.sshfl [vmem:[#allocation1 + $0x18] sm:$0xff pattern:$0x75316420]
    %599 = vrot.lane.b32.xlu0 %v595, 52
    %v600 = vpop.permute.xlu0 %599
    %601 = vrot.lane.b32.xlu0 %v596, 52
    %v602 = vpop.permute.xlu0 %601
    %603 = vrot.lane.b32.xlu0 %v597, 52
    %v604 = vpop.permute.xlu0 %603
    %605 = vrot.lane.b32.xlu0 %v598, 52
    %v606 = vpop.permute.xlu0 %605
    %vm607 = vcmask 424960
    %v608 = vsel %vm607, %v600, %v602
    %v609 = vsel %vm607, %v602, %v604
    %v610 = vsel %vm607, %v604, %v606
    %614 = vst.msk [vmem:[#allocation2 + $0x150] sm:$0xf] %vm201, %v608
    %615 = vst [vmem:[#allocation2 + $0x158] sm:$0xf] %v609
    %616 = vst.msk [vmem:[#allocation2 + $0x160] sm:$0xf] %vm204, %v610
    %v617 = vld [vmem:[#allocation7] sm:$0xf]
    %v618 = vld [vmem:[#allocation2] sm:$0xff]
    %v619 = vld [vmem:[#allocation2 + $0x8] sm:$0xff]
    %v620 = vld [vmem:[#allocation2 + $0x10] sm:$0xff]
    %v621 = vld [vmem:[#allocation2 + $0x18] sm:$0xff]
    %v622 = vld [vmem:[#allocation2 + $0x20] sm:$0xff]
    %v623 = vld [vmem:[#allocation2 + $0x28] sm:$0xff]
    %v624 = vld [vmem:[#allocation2 + $0x30] sm:$0xff]
    %v625 = vld [vmem:[#allocation2 + $0x38] sm:$0xff]
    %v626 = vld [vmem:[#allocation2 + $0x40] sm:$0xff]
    %v627 = vld [vmem:[#allocation2 + $0x48] sm:$0xff]
    %v628 = vld [vmem:[#allocation2 + $0x50] sm:$0xff]
    %v629 = vld [vmem:[#allocation2 + $0x58] sm:$0xff]
    %v630 = vld [vmem:[#allocation2 + $0x60] sm:$0xff]
    %v631 = vld [vmem:[#allocation2 + $0x68] sm:$0xff]
    %v632 = vld [vmem:[#allocation2 + $0x70] sm:$0xff]
    %v633 = vld [vmem:[#allocation2 + $0x78] sm:$0xff]
    %v634 = vld [vmem:[#allocation2 + $0x80] sm:$0xff]
    %v635 = vld [vmem:[#allocation2 + $0x88] sm:$0xff]
    %v636 = vld [vmem:[#allocation2 + $0x90] sm:$0xff]
    %v637 = vld [vmem:[#allocation2 + $0x98] sm:$0xff]
    %v638 = vld [vmem:[#allocation2 + $0xa0] sm:$0xff]
    %v639 = vld [vmem:[#allocation2 + $0xa8] sm:$0xff]
    %v640 = vld [vmem:[#allocation2 + $0xb0] sm:$0xff]
    %v641 = vld [vmem:[#allocation2 + $0xb8] sm:$0xff]
    %v642 = vld [vmem:[#allocation2 + $0xc0] sm:$0xff]
    %v643 = vld [vmem:[#allocation2 + $0xc8] sm:$0xff]
    %v644 = vld [vmem:[#allocation2 + $0xd0] sm:$0xff]
    %v645 = vld [vmem:[#allocation2 + $0xd8] sm:$0xff]
    %v646 = vld [vmem:[#allocation2 + $0xe0] sm:$0xff]
    %v647 = vld [vmem:[#allocation2 + $0xe8] sm:$0xff]
    %v648 = vld [vmem:[#allocation2 + $0xf0] sm:$0xff]
    %v649 = vld [vmem:[#allocation2 + $0xf8] sm:$0xff]
    %v650 = vld [vmem:[#allocation2 + $0x100] sm:$0xff]
    %v651 = vld [vmem:[#allocation2 + $0x108] sm:$0xff]
    %v652 = vld [vmem:[#allocation2 + $0x110] sm:$0xff]
    %v653 = vld [vmem:[#allocation2 + $0x118] sm:$0xff]
    %v654 = vld [vmem:[#allocation2 + $0x120] sm:$0xff]
    %v655 = vld [vmem:[#allocation2 + $0x128] sm:$0xff]
    %v656 = vld [vmem:[#allocation2 + $0x130] sm:$0xff]
    %v657 = vld [vmem:[#allocation2 + $0x138] sm:$0xff]
    %v658 = vld [vmem:[#allocation2 + $0x140] sm:$0xff]
    %v659 = vld [vmem:[#allocation2 + $0x148] sm:$0xff]
    %v660 = vld [vmem:[#allocation2 + $0x150] sm:$0xff]
    %v661 = vld [vmem:[#allocation2 + $0x158] sm:$0xff]
    %v662 = vld [vmem:[#allocation2 + $0x160] sm:$0xff]
    %v664 = vsel %vm347, %v617, 0
    %666 = vmatpush.msra.mxu0 0.0
    %667 = vmatpush.msra.mxu0 0.0
    %668 = vmatpush.msra.mxu0 0.0
    %669 = vmatpush.msra.mxu0 0.0
    %670 = vmatpush.msra.mxu0 0.0
    %671 = vmatpush.msra.mxu0 0.0
    %672 = vmatpush.msra.mxu0 0.0
    %673 = vmatpush.msra.mxu0 %v658
    %674 = vmatpush.msra.mxu0 %v653
    %675 = vmatpush.msra.mxu0 %v648
    %676 = vmatpush.msra.mxu0 %v643
    %677 = vmatpush.msra.mxu0 %v638
    %678 = vmatpush.msra.mxu0 %v633
    %679 = vmatpush.msra.mxu0 %v628
    %680 = vmatpush.msra.mxu0 %v623
    %681 = vmatpush.msra.mxu0 %v618
    %682 = vmatmul.f32.gmra.mxu0 %v664
    %v683 = vpop.f32.mrf.mxu0
    %v684 = vadd.f32 0.0, %v683
    %685 = vdwg.mxu0
    %686 = vmatpush.msra.mxu0 0.0
    %687 = vmatpush.msra.mxu0 0.0
    %688 = vmatpush.msra.mxu0 0.0
    %689 = vmatpush.msra.mxu0 0.0
    %690 = vmatpush.msra.mxu0 0.0
    %691 = vmatpush.msra.mxu0 0.0
    %692 = vmatpush.msra.mxu0 0.0
    %693 = vmatpush.msra.mxu0 %v659
    %694 = vmatpush.msra.mxu0 %v654
    %695 = vmatpush.msra.mxu0 %v649
    %696 = vmatpush.msra.mxu0 %v644
    %697 = vmatpush.msra.mxu0 %v639
    %698 = vmatpush.msra.mxu0 %v634
    %699 = vmatpush.msra.mxu0 %v629
    %700 = vmatpush.msra.mxu0 %v624
    %701 = vmatpush.msra.mxu0 %v619
    %702 = vmatmul.f32.gmra.mxu0 %v664
    %v703 = vpop.f32.mrf.mxu0
    %v704 = vadd.f32 0.0, %v703
    %705 = vdwg.mxu0
    %706 = vmatpush.msra.mxu0 0.0
    %707 = vmatpush.msra.mxu0 0.0
    %708 = vmatpush.msra.mxu0 0.0
    %709 = vmatpush.msra.mxu0 0.0
    %710 = vmatpush.msra.mxu0 0.0
    %711 = vmatpush.msra.mxu0 0.0
    %712 = vmatpush.msra.mxu0 0.0
    %713 = vmatpush.msra.mxu0 %v660
    %714 = vmatpush.msra.mxu0 %v655
    %715 = vmatpush.msra.mxu0 %v650
    %716 = vmatpush.msra.mxu0 %v645
    %717 = vmatpush.msra.mxu0 %v640
    %718 = vmatpush.msra.mxu0 %v635
    %719 = vmatpush.msra.mxu0 %v630
    %720 = vmatpush.msra.mxu0 %v625
    %721 = vmatpush.msra.mxu0 %v620
    %722 = vmatmul.f32.gmra.mxu0 %v664
    %v723 = vpop.f32.mrf.mxu0
    %v724 = vadd.f32 0.0, %v723
    %725 = vdwg.mxu0
    %726 = vmatpush.msra.mxu0 0.0
    %727 = vmatpush.msra.mxu0 0.0
    %728 = vmatpush.msra.mxu0 0.0
    %729 = vmatpush.msra.mxu0 0.0
    %730 = vmatpush.msra.mxu0 0.0
    %731 = vmatpush.msra.mxu0 0.0
    %732 = vmatpush.msra.mxu0 0.0
    %733 = vmatpush.msra.mxu0 %v661
    %734 = vmatpush.msra.mxu0 %v656
    %735 = vmatpush.msra.mxu0 %v651
    %736 = vmatpush.msra.mxu0 %v646
    %737 = vmatpush.msra.mxu0 %v641
    %738 = vmatpush.msra.mxu0 %v636
    %739 = vmatpush.msra.mxu0 %v631
    %740 = vmatpush.msra.mxu0 %v626
    %741 = vmatpush.msra.mxu0 %v621
    %742 = vmatmul.f32.gmra.mxu0 %v664
    %v743 = vpop.f32.mrf.mxu0
    %v744 = vadd.f32 0.0, %v743
    %745 = vdwg.mxu0
    %746 = vmatpush.msra.mxu0 0.0
    %747 = vmatpush.msra.mxu0 0.0
    %748 = vmatpush.msra.mxu0 0.0
    %749 = vmatpush.msra.mxu0 0.0
    %750 = vmatpush.msra.mxu0 0.0
    %751 = vmatpush.msra.mxu0 0.0
    %752 = vmatpush.msra.mxu0 0.0
    %753 = vmatpush.msra.mxu0 %v662
    %754 = vmatpush.msra.mxu0 %v657
    %755 = vmatpush.msra.mxu0 %v652
    %756 = vmatpush.msra.mxu0 %v647
    %757 = vmatpush.msra.mxu0 %v642
    %758 = vmatpush.msra.mxu0 %v637
    %759 = vmatpush.msra.mxu0 %v632
    %760 = vmatpush.msra.mxu0 %v627
    %761 = vmatpush.msra.mxu0 %v622
    %762 = vmatmul.f32.gmra.mxu0 %v664
    %v763 = vpop.f32.mrf.mxu0
    %v764 = vadd.f32 0.0, %v763
    %765 = vdwg.mxu0
    %v766 = vmax.f32 %v684, 0.0
    %v767 = vmax.f32 %v704, 0.0
    %v768 = vmax.f32 %v724, 0.0
    %v769 = vmax.f32 %v744, 0.0
    %v770 = vmax.f32 %v764, 0.0
    %v771 = vld [vmem:[#allocation10] sm:$0x1f]
    %v773 = vperm.slane %v771, 0
    %v774 = vperm.slane %v771, 1
    %v775 = vperm.slane %v771, 2
    %v776 = vperm.slane %v771, 3
    %v777 = vperm.slane %v771, 4
    %v783 = vmul.f32 %v766, %v773
    %v784 = vmul.f32 %v767, %v774
    %v785 = vmul.f32 %v768, %v775
    %v786 = vmul.f32 %v769, %v776
    %v787 = vmul.f32 %v770, %v777
    %v791 = vrot.slane %v784, 4
    %v792 = vsel %vm150, %v783, %v791
    %793 = vrot.lane.b32.xlu0 %v792, 19
    %v794 = vpop.permute.xlu0 %793
    %795 = vrot.lane.b32.xlu0 %v785, 19
    %v796 = vpop.permute.xlu0 %795
    %v797 = vrot.slane %v794, 4
    %vm798 = vcmask 154624
    %v799 = vsel %vm798, %v797, %v794
    %v800 = vsel %vm798, %v797, %v796
    %vm803 = vcmask 1043608
    %vm804 = vmor %vm156, %vm803
    %805 = vst.msk [vmem:[#allocation3] sm:$0xff] %vm804, %v799
    %vm806 = vcmask 396288
    %807 = vst.msk [vmem:[#allocation3 + $0x8] sm:$0xf] %vm806, %v800
    %v810 = vrot.slane %v786, 4
    %v811 = vsel %vm150, %v785, %v810
    %812 = vrot.lane.b32.xlu0 %v811, 57
    %v813 = vpop.permute.xlu0 %812
    %814 = vrot.lane.b32.xlu0 %v787, 57
    %v815 = vpop.permute.xlu0 %814
    %v816 = vrot.slane %v813, 4
    %vm817 = vcmask 465920
    %v818 = vsel %vm817, %v816, %v813
    %v819 = vsel %vm817, %v816, %v815
    %vm822 = vcmask 1044152
    %vm823 = vmor %vm156, %vm822
    %824 = vst.msk [vmem:[#allocation3 + $0x8] sm:$0xff] %vm823, %v818
    %vm825 = vcmask 953344
    %826 = vst.msk [vmem:[#allocation3 + $0x10] sm:$0xf] %vm825, %v819
    %v827 = vld [vmem:[#allocation3] sm:$0xff]
    %v828 = vld [vmem:[#allocation3 + $0x8] sm:$0xf]
    %831 = vst [vmem:[#allocation1] ss:$2 sm:$0xff] %v827
    %s832 = scalar_lea.vmem [#allocation1], 16
    %833 = vst [vmem:[%s832] ss:$2 sm:$0xff] %v828
    %v834 = vld.sshfl [vmem:[#allocation1] sm:$0xff pattern:$0x75316420]
    %v835 = vld.sshfl [vmem:[#allocation1 + $0x8] sm:$0xff pattern:$0x75316420]
    %v836 = vld.sshfl [vmem:[#allocation1 + $0x10] sm:$0xff pattern:$0x75316420]
    %840 = vst [vmem:[#allocation2] sm:$0xf] %v834
    %841 = vst [vmem:[#allocation2 + $0x8] sm:$0xf] %v835
    %842 = vst.msk [vmem:[#allocation2 + $0x10] sm:$0xf] %vm177, %v836
    %v843 = vld [vmem:[#allocation3 + $0x8] sm:$0xff]
    %v844 = vld [vmem:[#allocation3 + $0x10] sm:$0xf]
    %847 = vst [vmem:[#allocation1] ss:$2 sm:$0xff] %v843
    %s848 = scalar_lea.vmem [#allocation1], 16
    %849 = vst [vmem:[%s848] ss:$2 sm:$0xff] %v844
    %v850 = vld.sshfl [vmem:[#allocation1] sm:$0xff pattern:$0x75316420]
    %v851 = vld.sshfl [vmem:[#allocation1 + $0x8] sm:$0xff pattern:$0x75316420]
    %v852 = vld.sshfl [vmem:[#allocation1 + $0x10] sm:$0xff pattern:$0x75316420]
    %853 = vrot.lane.b32.xlu0 %v850, 90
    %v854 = vpop.permute.xlu0 %853
    %855 = vrot.lane.b32.xlu0 %v851, 90
    %v856 = vpop.permute.xlu0 %855
    %857 = vrot.lane.b32.xlu0 %v852, 90
    %v858 = vpop.permute.xlu0 %857
    %v859 = vsel %vm195, %v854, %v856
    %v860 = vsel %vm195, %v856, %v858
    %864 = vst.msk [vmem:[#allocation2 + $0x10] sm:$0xf] %vm201, %v859
    %865 = vst [vmem:[#allocation2 + $0x18] sm:$0xf] %v860
    %866 = vst.msk [vmem:[#allocation2 + $0x20] sm:$0xf] %vm204, %v858
    %v867 = vld [vmem:[#allocation3] sm:$0xff]
    %v868 = vld [vmem:[#allocation3 + $0x8] sm:$0xf]
    %871 = vst [vmem:[#allocation1] ss:$2 sm:$0xff] %v867
    %s872 = scalar_lea.vmem [#allocation1], 16
    %873 = vst [vmem:[%s872] ss:$2 sm:$0xff] %v868
    %v874 = vld.sshfl [vmem:[#allocation1] sm:$0xff pattern:$0x75316420]
    %v875 = vld.sshfl [vmem:[#allocation1 + $0x8] sm:$0xff pattern:$0x75316420]
    %v876 = vld.sshfl [vmem:[#allocation1 + $0x10] sm:$0xff pattern:$0x75316420]
    %877 = vrot.lane.b32.xlu0 %v874, 127
    %v878 = vpop.permute.xlu0 %877
    %879 = vrot.lane.b32.xlu0 %v875, 127
    %v880 = vpop.permute.xlu0 %879
    %881 = vrot.lane.b32.xlu0 %v876, 127
    %v882 = vpop.permute.xlu0 %881
    %v883 = vsel %vm222, %v878, %v880
    %v884 = vsel %vm222, %v880, %v882
    %888 = vst [vmem:[#allocation2 + $0x28] sm:$0xf] %v883
    %889 = vst [vmem:[#allocation2 + $0x30] sm:$0xf] %v884
    %890 = vst.msk [vmem:[#allocation2 + $0x38] sm:$0xf] %vm177, %v882
    %v891 = vld [vmem:[#allocation3 + $0x8] sm:$0xff]
    %v892 = vld [vmem:[#allocation3 + $0x10] sm:$0xf]
    %895 = vst [vmem:[#allocation1] ss:$2 sm:$0xff] %v891
    %s896 = scalar_lea.vmem [#allocation1], 16
    %897 = vst [vmem:[%s896] ss:$2 sm:$0xff] %v892
    %v898 = vld.sshfl [vmem:[#allocation1] sm:$0xff pattern:$0x75316420]
    %v899 = vld.sshfl [vmem:[#allocation1 + $0x8] sm:$0xff pattern:$0x75316420]
    %v900 = vld.sshfl [vmem:[#allocation1 + $0x10] sm:$0xff pattern:$0x75316420]
    %901 = vrot.lane.b32.xlu0 %v898, 89
    %v902 = vpop.permute.xlu0 %901
    %903 = vrot.lane.b32.xlu0 %v899, 89
    %v904 = vpop.permute.xlu0 %903
    %905 = vrot.lane.b32.xlu0 %v900, 89
    %v906 = vpop.permute.xlu0 %905
    %v907 = vsel %vm247, %v902, %v904
    %v908 = vsel %vm247, %v904, %v906
    %912 = vst.msk [vmem:[#allocation2 + $0x38] sm:$0xf] %vm201, %v907
    %913 = vst [vmem:[#allocation2 + $0x40] sm:$0xf] %v908
    %914 = vst.msk [vmem:[#allocation2 + $0x48] sm:$0xf] %vm204, %v906
    %v915 = vld [vmem:[#allocation3] sm:$0xff]
    %v916 = vld [vmem:[#allocation3 + $0x8] sm:$0xf]
    %919 = vst [vmem:[#allocation1] ss:$2 sm:$0xff] %v915
    %s920 = scalar_lea.vmem [#allocation1], 16
    %921 = vst [vmem:[%s920] ss:$2 sm:$0xff] %v916
    %v922 = vld.sshfl [vmem:[#allocation1] sm:$0xff pattern:$0x75316420]
    %v923 = vld.sshfl [vmem:[#allocation1 + $0x8] sm:$0xff pattern:$0x75316420]
    %v924 = vld.sshfl [vmem:[#allocation1 + $0x10] sm:$0xff pattern:$0x75316420]
    %925 = vrot.lane.b32.xlu0 %v922, 126
    %v926 = vpop.permute.xlu0 %925
    %927 = vrot.lane.b32.xlu0 %v923, 126
    %v928 = vpop.permute.xlu0 %927
    %929 = vrot.lane.b32.xlu0 %v924, 126
    %v930 = vpop.permute.xlu0 %929
    %v931 = vsel %vm272, %v926, %v928
    %v932 = vsel %vm272, %v928, %v930
    %936 = vst [vmem:[#allocation2 + $0x50] sm:$0xf] %v931
    %937 = vst [vmem:[#allocation2 + $0x58] sm:$0xf] %v932
    %938 = vst.msk [vmem:[#allocation2 + $0x60] sm:$0xf] %vm177, %v930
    %v939 = vld [vmem:[#allocation3 + $0x8] sm:$0xff]
    %v940 = vld [vmem:[#allocation3 + $0x10] sm:$0xf]
    %943 = vst [vmem:[#allocation1] ss:$2 sm:$0xff] %v939
    %s944 = scalar_lea.vmem [#allocation1], 16
    %945 = vst [vmem:[%s944] ss:$2 sm:$0xff] %v940
    %v946 = vld.sshfl [vmem:[#allocation1] sm:$0xff pattern:$0x75316420]
    %v947 = vld.sshfl [vmem:[#allocation1 + $0x8] sm:$0xff pattern:$0x75316420]
    %v948 = vld.sshfl [vmem:[#allocation1 + $0x10] sm:$0xff pattern:$0x75316420]
    %949 = vrot.lane.b32.xlu0 %v946, 88
    %v950 = vpop.permute.xlu0 %949
    %951 = vrot.lane.b32.xlu0 %v947, 88
    %v952 = vpop.permute.xlu0 %951
    %953 = vrot.lane.b32.xlu0 %v948, 88
    %v954 = vpop.permute.xlu0 %953
    %v955 = vsel %vm297, %v950, %v952
    %v956 = vsel %vm297, %v952, %v954
    %960 = vst.msk [vmem:[#allocation2 + $0x60] sm:$0xf] %vm201, %v955
    %961 = vst [vmem:[#allocation2 + $0x68] sm:$0xf] %v956
    %962 = vst.msk [vmem:[#allocation2 + $0x70] sm:$0xf] %vm204, %v954
    %v963 = vld [vmem:[#allocation3] sm:$0xff]
    %v964 = vld [vmem:[#allocation3 + $0x8] sm:$0xf]
    %967 = vst [vmem:[#allocation1] ss:$2 sm:$0xff] %v963
    %s968 = scalar_lea.vmem [#allocation1], 16
    %969 = vst [vmem:[%s968] ss:$2 sm:$0xff] %v964
    %v970 = vld.sshfl [vmem:[#allocation1] sm:$0xff pattern:$0x75316420]
    %v971 = vld.sshfl [vmem:[#allocation1 + $0x8] sm:$0xff pattern:$0x75316420]
    %v972 = vld.sshfl [vmem:[#allocation1 + $0x10] sm:$0xff pattern:$0x75316420]
    %973 = vrot.lane.b32.xlu0 %v970, 110
    %v974 = vpop.permute.xlu0 %973
    %975 = vrot.lane.b32.xlu0 %v971, 110
    %v976 = vpop.permute.xlu0 %975
    %977 = vrot.lane.b32.xlu0 %v972, 110
    %v978 = vpop.permute.xlu0 %977
    %v979 = vsel %vm322, %v974, %v976
    %v980 = vsel %vm322, %v976, %v978
    %984 = vst [vmem:[#allocation2 + $0x78] sm:$0xf] %v979
    %985 = vst [vmem:[#allocation2 + $0x80] sm:$0xf] %v980
    %986 = vst.msk [vmem:[#allocation2 + $0x88] sm:$0xf] %vm177, %v978
    %v987 = vld [vmem:[#allocation3 + $0x8] sm:$0xff]
    %v988 = vld [vmem:[#allocation3 + $0x10] sm:$0xf]
    %991 = vst [vmem:[#allocation1] ss:$2 sm:$0xff] %v987
    %s992 = scalar_lea.vmem [#allocation1], 16
    %993 = vst [vmem:[%s992] ss:$2 sm:$0xff] %v988
    %v994 = vld.sshfl [vmem:[#allocation1] sm:$0xff pattern:$0x75316420]
    %v995 = vld.sshfl [vmem:[#allocation1 + $0x8] sm:$0xff pattern:$0x75316420]
    %v996 = vld.sshfl [vmem:[#allocation1 + $0x10] sm:$0xff pattern:$0x75316420]
    %997 = vrot.lane.b32.xlu0 %v994, 72
    %v998 = vpop.permute.xlu0 %997
    %999 = vrot.lane.b32.xlu0 %v995, 72
    %v1000 = vpop.permute.xlu0 %999
    %1001 = vrot.lane.b32.xlu0 %v996, 72
    %v1002 = vpop.permute.xlu0 %1001
    %v1003 = vsel %vm347, %v998, %v1000
    %v1004 = vsel %vm347, %v1000, %v1002
    %1008 = vst.msk [vmem:[#allocation2 + $0x88] sm:$0xf] %vm201, %v1003
    %1009 = vst [vmem:[#allocation2 + $0x90] sm:$0xf] %v1004
    %1010 = vst.msk [vmem:[#allocation2 + $0x98] sm:$0xf] %vm204, %v1002
    %v1011 = vld [vmem:[#allocation3] sm:$0xff]
    %v1012 = vld [vmem:[#allocation3 + $0x8] sm:$0xf]
    %1015 = vst [vmem:[#allocation1] ss:$2 sm:$0xff] %v1011
    %s1016 = scalar_lea.vmem [#allocation1], 16
    %1017 = vst [vmem:[%s1016] ss:$2 sm:$0xff] %v1012
    %v1018 = vld.sshfl [vmem:[#allocation1] sm:$0xff pattern:$0x75316420]
    %v1019 = vld.sshfl [vmem:[#allocation1 + $0x8] sm:$0xff pattern:$0x75316420]
    %v1020 = vld.sshfl [vmem:[#allocation1 + $0x10] sm:$0xff pattern:$0x75316420]
    %1021 = vrot.lane.b32.xlu0 %v1018, 109
    %v1022 = vpop.permute.xlu0 %1021
    %1023 = vrot.lane.b32.xlu0 %v1019, 109
    %v1024 = vpop.permute.xlu0 %1023
    %1025 = vrot.lane.b32.xlu0 %v1020, 109
    %v1026 = vpop.permute.xlu0 %1025
    %v1027 = vsel %vm372, %v1022, %v1024
    %v1028 = vsel %vm372, %v1024, %v1026
    %1032 = vst [vmem:[#allocation2 + $0xa0] sm:$0xf] %v1027
    %1033 = vst [vmem:[#allocation2 + $0xa8] sm:$0xf] %v1028
    %1034 = vst.msk [vmem:[#allocation2 + $0xb0] sm:$0xf] %vm177, %v1026
    %v1035 = vld [vmem:[#allocation3 + $0x8] sm:$0xff]
    %v1036 = vld [vmem:[#allocation3 + $0x10] sm:$0xf]
    %1039 = vst [vmem:[#allocation1] ss:$2 sm:$0xff] %v1035
    %s1040 = scalar_lea.vmem [#allocation1], 16
    %1041 = vst [vmem:[%s1040] ss:$2 sm:$0xff] %v1036
    %v1042 = vld.sshfl [vmem:[#allocation1] sm:$0xff pattern:$0x75316420]
    %v1043 = vld.sshfl [vmem:[#allocation1 + $0x8] sm:$0xff pattern:$0x75316420]
    %v1044 = vld.sshfl [vmem:[#allocation1 + $0x10] sm:$0xff pattern:$0x75316420]
    %1045 = vrot.lane.b32.xlu0 %v1042, 71
    %v1046 = vpop.permute.xlu0 %1045
    %1047 = vrot.lane.b32.xlu0 %v1043, 71
    %v1048 = vpop.permute.xlu0 %1047
    %1049 = vrot.lane.b32.xlu0 %v1044, 71
    %v1050 = vpop.permute.xlu0 %1049
    %v1051 = vsel %vm397, %v1046, %v1048
    %v1052 = vsel %vm397, %v1048, %v1050
    %1056 = vst.msk [vmem:[#allocation2 + $0xb0] sm:$0xf] %vm201, %v1051
    %1057 = vst [vmem:[#allocation2 + $0xb8] sm:$0xf] %v1052
    %1058 = vst.msk [vmem:[#allocation2 + $0xc0] sm:$0xf] %vm204, %v1050
    %v1059 = vld [vmem:[#allocation3] sm:$0xff]
    %v1060 = vld [vmem:[#allocation3 + $0x8] sm:$0xf]
    %1063 = vst [vmem:[#allocation1] ss:$2 sm:$0xff] %v1059
    %s1064 = scalar_lea.vmem [#allocation1], 16
    %1065 = vst [vmem:[%s1064] ss:$2 sm:$0xff] %v1060
    %v1066 = vld.sshfl [vmem:[#allocation1] sm:$0xff pattern:$0x75316420]
    %v1067 = vld.sshfl [vmem:[#allocation1 + $0x8] sm:$0xff pattern:$0x75316420]
    %v1068 = vld.sshfl [vmem:[#allocation1 + $0x10] sm:$0xff pattern:$0x75316420]
    %1069 = vrot.lane.b32.xlu0 %v1066, 108
    %v1070 = vpop.permute.xlu0 %1069
    %1071 = vrot.lane.b32.xlu0 %v1067, 108
    %v1072 = vpop.permute.xlu0 %1071
    %1073 = vrot.lane.b32.xlu0 %v1068, 108
    %v1074 = vpop.permute.xlu0 %1073
    %v1075 = vsel %vm422, %v1070, %v1072
    %v1076 = vsel %vm422, %v1072, %v1074
    %1080 = vst [vmem:[#allocation2 + $0xc8] sm:$0xf] %v1075
    %1081 = vst [vmem:[#allocation2 + $0xd0] sm:$0xf] %v1076
    %1082 = vst.msk [vmem:[#allocation2 + $0xd8] sm:$0xf] %vm177, %v1074
    %v1083 = vld [vmem:[#allocation3 + $0x8] sm:$0xff]
    %v1084 = vld [vmem:[#allocation3 + $0x10] sm:$0xf]
    %1087 = vst [vmem:[#allocation1] ss:$2 sm:$0xff] %v1083
    %s1088 = scalar_lea.vmem [#allocation1], 16
    %1089 = vst [vmem:[%s1088] ss:$2 sm:$0xff] %v1084
    %v1090 = vld.sshfl [vmem:[#allocation1] sm:$0xff pattern:$0x75316420]
    %v1091 = vld.sshfl [vmem:[#allocation1 + $0x8] sm:$0xff pattern:$0x75316420]
    %v1092 = vld.sshfl [vmem:[#allocation1 + $0x10] sm:$0xff pattern:$0x75316420]
    %1093 = vrot.lane.b32.xlu0 %v1090, 70
    %v1094 = vpop.permute.xlu0 %1093
    %1095 = vrot.lane.b32.xlu0 %v1091, 70
    %v1096 = vpop.permute.xlu0 %1095
    %1097 = vrot.lane.b32.xlu0 %v1092, 70
    %v1098 = vpop.permute.xlu0 %1097
    %v1099 = vsel %vm447, %v1094, %v1096
    %v1100 = vsel %vm447, %v1096, %v1098
    %1104 = vst.msk [vmem:[#allocation2 + $0xd8] sm:$0xf] %vm201, %v1099
    %1105 = vst [vmem:[#allocation2 + $0xe0] sm:$0xf] %v1100
    %1106 = vst.msk [vmem:[#allocation2 + $0xe8] sm:$0xf] %vm204, %v1098
    %v1107 = vld [vmem:[#allocation3] sm:$0xff]
    %v1108 = vld [vmem:[#allocation3 + $0x8] sm:$0xf]
    %1111 = vst [vmem:[#allocation1] ss:$2 sm:$0xff] %v1107
    %s1112 = scalar_lea.vmem [#allocation1], 16
    %1113 = vst [vmem:[%s1112] ss:$2 sm:$0xff] %v1108
    %v1114 = vld.sshfl [vmem:[#allocation1] sm:$0xff pattern:$0x75316420]
    %v1115 = vld.sshfl [vmem:[#allocation1 + $0x8] sm:$0xff pattern:$0x75316420]
    %v1116 = vld.sshfl [vmem:[#allocation1 + $0x10] sm:$0xff pattern:$0x75316420]
    %1117 = vrot.lane.b32.xlu0 %v1114, 92
    %v1118 = vpop.permute.xlu0 %1117
    %1119 = vrot.lane.b32.xlu0 %v1115, 92
    %v1120 = vpop.permute.xlu0 %1119
    %1121 = vrot.lane.b32.xlu0 %v1116, 92
    %v1122 = vpop.permute.xlu0 %1121
    %v1123 = vsel %vm472, %v1118, %v1120
    %v1124 = vsel %vm472, %v1120, %v1122
    %1128 = vst [vmem:[#allocation2 + $0xf0] sm:$0xf] %v1123
    %1129 = vst [vmem:[#allocation2 + $0xf8] sm:$0xf] %v1124
    %1130 = vst.msk [vmem:[#allocation2 + $0x100] sm:$0xf] %vm177, %v1122
    %v1131 = vld [vmem:[#allocation3 + $0x8] sm:$0xff]
    %v1132 = vld [vmem:[#allocation3 + $0x10] sm:$0xff]
    %1135 = vst [vmem:[#allocation1] ss:$2 sm:$0xff] %v1131
    %s1136 = scalar_lea.vmem [#allocation1], 16
    %1137 = vst [vmem:[%s1136] ss:$2 sm:$0xff] %v1132
    %v1138 = vld.sshfl [vmem:[#allocation1] sm:$0xff pattern:$0x75316420]
    %v1139 = vld.sshfl [vmem:[#allocation1 + $0x8] sm:$0xff pattern:$0x75316420]
    %v1140 = vld.sshfl [vmem:[#allocation1 + $0x10] sm:$0xff pattern:$0x75316420]
    %v1141 = vld.sshfl [vmem:[#allocation1 + $0x18] sm:$0xff pattern:$0x75316420]
    %1142 = vrot.lane.b32.xlu0 %v1138, 54
    %v1143 = vpop.permute.xlu0 %1142
    %1144 = vrot.lane.b32.xlu0 %v1139, 54
    %v1145 = vpop.permute.xlu0 %1144
    %1146 = vrot.lane.b32.xlu0 %v1140, 54
    %v1147 = vpop.permute.xlu0 %1146
    %1148 = vrot.lane.b32.xlu0 %v1141, 54
    %v1149 = vpop.permute.xlu0 %1148
    %v1150 = vsel %vm500, %v1143, %v1145
    %v1151 = vsel %vm500, %v1145, %v1147
    %v1152 = vsel %vm500, %v1147, %v1149
    %1156 = vst.msk [vmem:[#allocation2 + $0x100] sm:$0xf] %vm201, %v1150
    %1157 = vst [vmem:[#allocation2 + $0x108] sm:$0xf] %v1151
    %1158 = vst.msk [vmem:[#allocation2 + $0x110] sm:$0xf] %vm204, %v1152
    %v1159 = vld [vmem:[#allocation3] sm:$0xff]
    %v1160 = vld [vmem:[#allocation3 + $0x8] sm:$0xf]
    %1163 = vst [vmem:[#allocation1] ss:$2 sm:$0xff] %v1159
    %s1164 = scalar_lea.vmem [#allocation1], 16
    %1165 = vst [vmem:[%s1164] ss:$2 sm:$0xff] %v1160
    %v1166 = vld.sshfl [vmem:[#allocation1] sm:$0xff pattern:$0x75316420]
    %v1167 = vld.sshfl [vmem:[#allocation1 + $0x8] sm:$0xff pattern:$0x75316420]
    %v1168 = vld.sshfl [vmem:[#allocation1 + $0x10] sm:$0xff pattern:$0x75316420]
    %1169 = vrot.lane.b32.xlu0 %v1166, 91
    %v1170 = vpop.permute.xlu0 %1169
    %1171 = vrot.lane.b32.xlu0 %v1167, 91
    %v1172 = vpop.permute.xlu0 %1171
    %1173 = vrot.lane.b32.xlu0 %v1168, 91
    %v1174 = vpop.permute.xlu0 %1173
    %v1175 = vsel %vm526, %v1170, %v1172
    %v1176 = vsel %vm526, %v1172, %v1174
    %1180 = vst [vmem:[#allocation2 + $0x118] sm:$0xf] %v1175
    %1181 = vst [vmem:[#allocation2 + $0x120] sm:$0xf] %v1176
    %1182 = vst.msk [vmem:[#allocation2 + $0x128] sm:$0xf] %vm177, %v1174
    %v1183 = vld [vmem:[#allocation3 + $0x8] sm:$0xff]
    %v1184 = vld [vmem:[#allocation3 + $0x10] sm:$0xff]
    %1187 = vst [vmem:[#allocation1] ss:$2 sm:$0xff] %v1183
    %s1188 = scalar_lea.vmem [#allocation1], 16
    %1189 = vst [vmem:[%s1188] ss:$2 sm:$0xff] %v1184
    %v1190 = vld.sshfl [vmem:[#allocation1] sm:$0xff pattern:$0x75316420]
    %v1191 = vld.sshfl [vmem:[#allocation1 + $0x8] sm:$0xff pattern:$0x75316420]
    %v1192 = vld.sshfl [vmem:[#allocation1 + $0x10] sm:$0xff pattern:$0x75316420]
    %v1193 = vld.sshfl [vmem:[#allocation1 + $0x18] sm:$0xff pattern:$0x75316420]
    %1194 = vrot.lane.b32.xlu0 %v1190, 53
    %v1195 = vpop.permute.xlu0 %1194
    %1196 = vrot.lane.b32.xlu0 %v1191, 53
    %v1197 = vpop.permute.xlu0 %1196
    %1198 = vrot.lane.b32.xlu0 %v1192, 53
    %v1199 = vpop.permute.xlu0 %1198
    %1200 = vrot.lane.b32.xlu0 %v1193, 53
    %v1201 = vpop.permute.xlu0 %1200
    %v1202 = vsel %vm554, %v1195, %v1197
    %v1203 = vsel %vm554, %v1197, %v1199
    %v1204 = vsel %vm554, %v1199, %v1201
    %1208 = vst.msk [vmem:[#allocation2 + $0x128] sm:$0xf] %vm201, %v1202
    %1209 = vst [vmem:[#allocation2 + $0x130] sm:$0xf] %v1203
    %1210 = vst.msk [vmem:[#allocation2 + $0x138] sm:$0xf] %vm204, %v1204
    %v1211 = vld [vmem:[#allocation3] sm:$0xff]
    %v1212 = vld [vmem:[#allocation3 + $0x8] sm:$0xf]
    %1215 = vst [vmem:[#allocation1] ss:$2 sm:$0xff] %v1211
    %s1216 = scalar_lea.vmem [#allocation1], 16
    %1217 = vst [vmem:[%s1216] ss:$2 sm:$0xff] %v1212
    %v1218 = vld.sshfl [vmem:[#allocation1] sm:$0xff pattern:$0x75316420]
    %v1219 = vld.sshfl [vmem:[#allocation1 + $0x8] sm:$0xff pattern:$0x75316420]
    %v1220 = vld.sshfl [vmem:[#allocation1 + $0x10] sm:$0xff pattern:$0x75316420]
    %1221 = vrot.lane.b32.xlu0 %v1218, 90
    %v1222 = vpop.permute.xlu0 %1221
    %1223 = vrot.lane.b32.xlu0 %v1219, 90
    %v1224 = vpop.permute.xlu0 %1223
    %1225 = vrot.lane.b32.xlu0 %v1220, 90
    %v1226 = vpop.permute.xlu0 %1225
    %v1227 = vsel %vm195, %v1222, %v1224
    %v1228 = vsel %vm195, %v1224, %v1226
    %1232 = vst [vmem:[#allocation2 + $0x140] sm:$0xf] %v1227
    %1233 = vst [vmem:[#allocation2 + $0x148] sm:$0xf] %v1228
    %1234 = vst.msk [vmem:[#allocation2 + $0x150] sm:$0xf] %vm177, %v1226
    %v1235 = vld [vmem:[#allocation3 + $0x8] sm:$0xff]
    %v1236 = vld [vmem:[#allocation3 + $0x10] sm:$0xff]
    %1239 = vst [vmem:[#allocation1] ss:$2 sm:$0xff] %v1235
    %s1240 = scalar_lea.vmem [#allocation1], 16
    %1241 = vst [vmem:[%s1240] ss:$2 sm:$0xff] %v1236
    %v1242 = vld.sshfl [vmem:[#allocation1] sm:$0xff pattern:$0x75316420]
    %v1243 = vld.sshfl [vmem:[#allocation1 + $0x8] sm:$0xff pattern:$0x75316420]
    %v1244 = vld.sshfl [vmem:[#allocation1 + $0x10] sm:$0xff pattern:$0x75316420]
    %v1245 = vld.sshfl [vmem:[#allocation1 + $0x18] sm:$0xff pattern:$0x75316420]
    %1246 = vrot.lane.b32.xlu0 %v1242, 52
    %v1247 = vpop.permute.xlu0 %1246
    %1248 = vrot.lane.b32.xlu0 %v1243, 52
    %v1249 = vpop.permute.xlu0 %1248
    %1250 = vrot.lane.b32.xlu0 %v1244, 52
    %v1251 = vpop.permute.xlu0 %1250
    %1252 = vrot.lane.b32.xlu0 %v1245, 52
    %v1253 = vpop.permute.xlu0 %1252
    %v1254 = vsel %vm607, %v1247, %v1249
    %v1255 = vsel %vm607, %v1249, %v1251
    %v1256 = vsel %vm607, %v1251, %v1253
    %1260 = vst.msk [vmem:[#allocation2 + $0x150] sm:$0xf] %vm201, %v1254
    %1261 = vst [vmem:[#allocation2 + $0x158] sm:$0xf] %v1255
    %1262 = vst.msk [vmem:[#allocation2 + $0x160] sm:$0xf] %vm204, %v1256
    %v1263 = vld [vmem:[#allocation9] sm:$0xf]
    %v1264 = vld [vmem:[#allocation2] sm:$0xff]
    %v1265 = vld [vmem:[#allocation2 + $0x8] sm:$0xff]
    %v1266 = vld [vmem:[#allocation2 + $0x10] sm:$0xff]
    %v1267 = vld [vmem:[#allocation2 + $0x18] sm:$0xff]
    %v1268 = vld [vmem:[#allocation2 + $0x20] sm:$0xff]
    %v1269 = vld [vmem:[#allocation2 + $0x28] sm:$0xff]
    %v1270 = vld [vmem:[#allocation2 + $0x30] sm:$0xff]
    %v1271 = vld [vmem:[#allocation2 + $0x38] sm:$0xff]
    %v1272 = vld [vmem:[#allocation2 + $0x40] sm:$0xff]
    %v1273 = vld [vmem:[#allocation2 + $0x48] sm:$0xff]
    %v1274 = vld [vmem:[#allocation2 + $0x50] sm:$0xff]
    %v1275 = vld [vmem:[#allocation2 + $0x58] sm:$0xff]
    %v1276 = vld [vmem:[#allocation2 + $0x60] sm:$0xff]
    %v1277 = vld [vmem:[#allocation2 + $0x68] sm:$0xff]
    %v1278 = vld [vmem:[#allocation2 + $0x70] sm:$0xff]
    %v1279 = vld [vmem:[#allocation2 + $0x78] sm:$0xff]
    %v1280 = vld [vmem:[#allocation2 + $0x80] sm:$0xff]
    %v1281 = vld [vmem:[#allocation2 + $0x88] sm:$0xff]
    %v1282 = vld [vmem:[#allocation2 + $0x90] sm:$0xff]
    %v1283 = vld [vmem:[#allocation2 + $0x98] sm:$0xff]
    %v1284 = vld [vmem:[#allocation2 + $0xa0] sm:$0xff]
    %v1285 = vld [vmem:[#allocation2 + $0xa8] sm:$0xff]
    %v1286 = vld [vmem:[#allocation2 + $0xb0] sm:$0xff]
    %v1287 = vld [vmem:[#allocation2 + $0xb8] sm:$0xff]
    %v1288 = vld [vmem:[#allocation2 + $0xc0] sm:$0xff]
    %v1289 = vld [vmem:[#allocation2 + $0xc8] sm:$0xff]
    %v1290 = vld [vmem:[#allocation2 + $0xd0] sm:$0xff]
    %v1291 = vld [vmem:[#allocation2 + $0xd8] sm:$0xff]
    %v1292 = vld [vmem:[#allocation2 + $0xe0] sm:$0xff]
    %v1293 = vld [vmem:[#allocation2 + $0xe8] sm:$0xff]
    %v1294 = vld [vmem:[#allocation2 + $0xf0] sm:$0xff]
    %v1295 = vld [vmem:[#allocation2 + $0xf8] sm:$0xff]
    %v1296 = vld [vmem:[#allocation2 + $0x100] sm:$0xff]
    %v1297 = vld [vmem:[#allocation2 + $0x108] sm:$0xff]
    %v1298 = vld [vmem:[#allocation2 + $0x110] sm:$0xff]
    %v1299 = vld [vmem:[#allocation2 + $0x118] sm:$0xff]
    %v1300 = vld [vmem:[#allocation2 + $0x120] sm:$0xff]
    %v1301 = vld [vmem:[#allocation2 + $0x128] sm:$0xff]
    %v1302 = vld [vmem:[#allocation2 + $0x130] sm:$0xff]
    %v1303 = vld [vmem:[#allocation2 + $0x138] sm:$0xff]
    %v1304 = vld [vmem:[#allocation2 + $0x140] sm:$0xff]
    %v1305 = vld [vmem:[#allocation2 + $0x148] sm:$0xff]
    %v1306 = vld [vmem:[#allocation2 + $0x150] sm:$0xff]
    %v1307 = vld [vmem:[#allocation2 + $0x158] sm:$0xff]
    %v1308 = vld [vmem:[#allocation2 + $0x160] sm:$0xff]
    %v1310 = vsel %vm347, %v1263, 0
    %1312 = vmatpush.msra.mxu0 0.0
    %1313 = vmatpush.msra.mxu0 0.0
    %1314 = vmatpush.msra.mxu0 0.0
    %1315 = vmatpush.msra.mxu0 0.0
    %1316 = vmatpush.msra.mxu0 0.0
    %1317 = vmatpush.msra.mxu0 0.0
    %1318 = vmatpush.msra.mxu0 0.0
    %1319 = vmatpush.msra.mxu0 %v1304
    %1320 = vmatpush.msra.mxu0 %v1299
    %1321 = vmatpush.msra.mxu0 %v1294
    %1322 = vmatpush.msra.mxu0 %v1289
    %1323 = vmatpush.msra.mxu0 %v1284
    %1324 = vmatpush.msra.mxu0 %v1279
    %1325 = vmatpush.msra.mxu0 %v1274
    %1326 = vmatpush.msra.mxu0 %v1269
    %1327 = vmatpush.msra.mxu0 %v1264
    %1328 = vmatmul.f32.gmra.mxu0 %v1310
    %v1329 = vpop.f32.mrf.mxu0
    %v1330 = vadd.f32 0.0, %v1329
    %1331 = vdwg.mxu0
    %1332 = vmatpush.msra.mxu0 0.0
    %1333 = vmatpush.msra.mxu0 0.0
    %1334 = vmatpush.msra.mxu0 0.0
    %1335 = vmatpush.msra.mxu0 0.0
    %1336 = vmatpush.msra.mxu0 0.0
    %1337 = vmatpush.msra.mxu0 0.0
    %1338 = vmatpush.msra.mxu0 0.0
    %1339 = vmatpush.msra.mxu0 %v1305
    %1340 = vmatpush.msra.mxu0 %v1300
    %1341 = vmatpush.msra.mxu0 %v1295
    %1342 = vmatpush.msra.mxu0 %v1290
    %1343 = vmatpush.msra.mxu0 %v1285
    %1344 = vmatpush.msra.mxu0 %v1280
    %1345 = vmatpush.msra.mxu0 %v1275
    %1346 = vmatpush.msra.mxu0 %v1270
    %1347 = vmatpush.msra.mxu0 %v1265
    %1348 = vmatmul.f32.gmra.mxu0 %v1310
    %v1349 = vpop.f32.mrf.mxu0
    %v1350 = vadd.f32 0.0, %v1349
    %1351 = vdwg.mxu0
    %1352 = vmatpush.msra.mxu0 0.0
    %1353 = vmatpush.msra.mxu0 0.0
    %1354 = vmatpush.msra.mxu0 0.0
    %1355 = vmatpush.msra.mxu0 0.0
    %1356 = vmatpush.msra.mxu0 0.0
    %1357 = vmatpush.msra.mxu0 0.0
    %1358 = vmatpush.msra.mxu0 0.0
    %1359 = vmatpush.msra.mxu0 %v1306
    %1360 = vmatpush.msra.mxu0 %v1301
    %1361 = vmatpush.msra.mxu0 %v1296
    %1362 = vmatpush.msra.mxu0 %v1291
    %1363 = vmatpush.msra.mxu0 %v1286
    %1364 = vmatpush.msra.mxu0 %v1281
    %1365 = vmatpush.msra.mxu0 %v1276
    %1366 = vmatpush.msra.mxu0 %v1271
    %1367 = vmatpush.msra.mxu0 %v1266
    %1368 = vmatmul.f32.gmra.mxu0 %v1310
    %v1369 = vpop.f32.mrf.mxu0
    %v1370 = vadd.f32 0.0, %v1369
    %1371 = vdwg.mxu0
    %1372 = vmatpush.msra.mxu0 0.0
    %1373 = vmatpush.msra.mxu0 0.0
    %1374 = vmatpush.msra.mxu0 0.0
    %1375 = vmatpush.msra.mxu0 0.0
    %1376 = vmatpush.msra.mxu0 0.0
    %1377 = vmatpush.msra.mxu0 0.0
    %1378 = vmatpush.msra.mxu0 0.0
    %1379 = vmatpush.msra.mxu0 %v1307
    %1380 = vmatpush.msra.mxu0 %v1302
    %1381 = vmatpush.msra.mxu0 %v1297
    %1382 = vmatpush.msra.mxu0 %v1292
    %1383 = vmatpush.msra.mxu0 %v1287
    %1384 = vmatpush.msra.mxu0 %v1282
    %1385 = vmatpush.msra.mxu0 %v1277
    %1386 = vmatpush.msra.mxu0 %v1272
    %1387 = vmatpush.msra.mxu0 %v1267
    %1388 = vmatmul.f32.gmra.mxu0 %v1310
    %v1389 = vpop.f32.mrf.mxu0
    %v1390 = vadd.f32 0.0, %v1389
    %1391 = vdwg.mxu0
    %1392 = vmatpush.msra.mxu0 0.0
    %1393 = vmatpush.msra.mxu0 0.0
    %1394 = vmatpush.msra.mxu0 0.0
    %1395 = vmatpush.msra.mxu0 0.0
    %1396 = vmatpush.msra.mxu0 0.0
    %1397 = vmatpush.msra.mxu0 0.0
    %1398 = vmatpush.msra.mxu0 0.0
    %1399 = vmatpush.msra.mxu0 %v1308
    %1400 = vmatpush.msra.mxu0 %v1303
    %1401 = vmatpush.msra.mxu0 %v1298
    %1402 = vmatpush.msra.mxu0 %v1293
    %1403 = vmatpush.msra.mxu0 %v1288
    %1404 = vmatpush.msra.mxu0 %v1283
    %1405 = vmatpush.msra.mxu0 %v1278
    %1406 = vmatpush.msra.mxu0 %v1273
    %1407 = vmatpush.msra.mxu0 %v1268
    %1408 = vmatmul.f32.gmra.mxu0 %v1310
    %v1409 = vpop.f32.mrf.mxu0
    %v1410 = vadd.f32 0.0, %v1409
    %1411 = vdwg.mxu0
    %v1412 = vld [vmem:[#allocation4] sm:$0xff]
    %v1413 = vld [vmem:[#allocation4 + $0x8] sm:$0xf]
    %1416 = vst [vmem:[#allocation1] ss:$2 sm:$0xff] %v1412
    %s1417 = scalar_lea.vmem [#allocation1], 16
    %1418 = vst [vmem:[%s1417] ss:$2 sm:$0xff] %v1413
    %v1419 = vld.sshfl [vmem:[#allocation1] sm:$0xff pattern:$0x75316420]
    %v1420 = vld.sshfl [vmem:[#allocation1 + $0x8] sm:$0xff pattern:$0x75316420]
    %v1421 = vld.sshfl [vmem:[#allocation1 + $0x10] sm:$0xff pattern:$0x75316420]
    %1422 = vrot.lane.b32.xlu0 %v1419, 109
    %v1423 = vpop.permute.xlu0 %1422
    %1424 = vrot.lane.b32.xlu0 %v1420, 109
    %v1425 = vpop.permute.xlu0 %1424
    %1426 = vrot.lane.b32.xlu0 %v1421, 109
    %v1427 = vpop.permute.xlu0 %1426
    %v1428 = vsel %vm372, %v1423, %v1425
    %v1429 = vsel %vm372, %v1425, %v1427
    %v1433 = vadd.f32 %v1330, %v1428
    %v1434 = vadd.f32 %v1350, %v1429
    %v1435 = vadd.f32 %v1370, %v1427
    %v1439 = vrot.slane %v1434, 4
    %v1440 = vsel %vm150, %v1433, %v1439
    %1441 = vrot.lane.b32.xlu0 %v1440, 19
    %v1442 = vpop.permute.xlu0 %1441
    %1443 = vrot.lane.b32.xlu0 %v1435, 19
    %v1444 = vpop.permute.xlu0 %1443
    %v1445 = vrot.slane %v1442, 4
    %v1446 = vsel %vm798, %v1445, %v1442
    %v1447 = vsel %vm798, %v1445, %v1444
    %1450 = vst.msk [vmem:[#allocation12] sm:$0xff] %vm804, %v1446
    %1451 = vst.msk [vmem:[#allocation12 + $0x8] sm:$0xf] %vm806, %v1447
    %v1452 = vld [vmem:[%s135] sm:$0xff]
    %v1453 = vld [vmem:[%s135 + $0x8] sm:$0xf]
    %1456 = vst [vmem:[#allocation1] ss:$2 sm:$0xff] %v1452
    %s1457 = scalar_lea.vmem [#allocation1], 16
    %1458 = vst [vmem:[%s1457] ss:$2 sm:$0xff] %v1453
    %v1459 = vld.sshfl [vmem:[#allocation1] sm:$0xff pattern:$0x75316420]
    %v1460 = vld.sshfl [vmem:[#allocation1 + $0x8] sm:$0xff pattern:$0x75316420]
    %v1461 = vld.sshfl [vmem:[#allocation1 + $0x10] sm:$0xff pattern:$0x75316420]
    %1462 = vrot.lane.b32.xlu0 %v1459, 11
    %v1463 = vpop.permute.xlu0 %1462
    %1464 = vrot.lane.b32.xlu0 %v1460, 11
    %v1465 = vpop.permute.xlu0 %1464
    %1466 = vrot.lane.b32.xlu0 %v1461, 11
    %v1467 = vpop.permute.xlu0 %1466
    %vm1468 = vcmask 89088
    %v1469 = vsel %vm1468, %v1463, %v1465
    %v1470 = vsel %vm1468, %v1465, %v1467
    %v1474 = vadd.f32 %v1370, %v1463
    %v1475 = vadd.f32 %v1390, %v1469
    %v1476 = vadd.f32 %v1410, %v1470
    %v1480 = vrot.slane %v1475, 4
    %v1481 = vsel %vm150, %v1474, %v1480
    %1482 = vrot.lane.b32.xlu0 %v1481, 117
    %v1483 = vpop.permute.xlu0 %1482
    %1484 = vrot.lane.b32.xlu0 %v1476, 117
    %v1485 = vpop.permute.xlu0 %1484
    %v1486 = vrot.slane %v1483, 4
    %v1487 = vrot.slane %v1485, 4
    %v1488 = vsel %vm150, %v1486, %v1487
    %vm1489 = vcmask 957440
    %v1490 = vsel %vm1489, %v1483, %v1488
    %s1493 = scalar_lea.vmem [#allocation12], 12
    %1494 = vst.msk [vmem:[%s1493] sm:$0xff] %vm804, %v1490
    %1495 = vst.msk [vmem:[%s1493 + $0x8] sm:$0xf] %vm806, %v1485
    // Predicated region
    $region34: #{tpu_custom_call.1} parent=1 // pred_check
      _
    $region35: #{tpu_custom_call.1} parent=1 // pred_check_branch
      %1497 = sbr.rel (0) target = $region37
    $region36: #{tpu_custom_call.1} parent=1 // pred_region
      %1499 = vsyncadd [#allocation6], 0
      %s1500 = sshll.u32 [#allocation12], 4
      %s1501 = int_to_ptr.vmem [resolvable:$true] %s1500
      %s1502 = sshll.u32 %s4, 4
      %s1503 = int_to_ptr.hbm [resolvable:$true] %s1502
      %1508 = dma.vmem_to_hbm [thread:$0]  %s1501, 384, %s1503, [#allocation6], 192, 192, 12
    $region37: #{tpu_custom_call.1} parent=1 // pred_fallthru
      _
    // Predicated region
    $region38: #{tpu_custom_call.1} parent=1 // pred_check
      _
    $region39: #{tpu_custom_call.1} parent=1 // pred_check_branch
      %1510 = sbr.rel (0) target = $region41
    $region40: #{tpu_custom_call.1} parent=1 // pred_region
      %1512 = dma.done [#allocation6], 384
    $region41: #{tpu_custom_call.1} parent=1 // pred_fallthru
      _
    %1513 = vsyncpa [#allocation5], 1
    %1514 = vsyncpa [#allocation8], 1
    %1515 = vsyncpa [#allocation11], 1
    %1516 = vsyncpa [#allocation6], 1

</llo_original>
